<compile_context>
chip_gen: v5e
topology: v5e:2x2
jax: 0.10.0
libtpu: 0.0.40
codegen_flags: <defaults>
</compile_context>

<pallas_src>
import math
from functools import partial

import jax
import jax.numpy as jnp
from jax import lax
from jax.experimental import pallas as pl
from jax.experimental.pallas import tpu as pltpu

_EPS_NORM = 1e-12     # F.normalize default eps
_MASKED = 1e30        # sentinel for already-extracted entries (python float, f32-safe)


# --------------------------------------------------------------------------------
# Kernel A: per-point multiscale densities + kNN entropies from a (TM, N) d2 tile.
# --------------------------------------------------------------------------------
def _make_stats_kernel(tm, n, scales, k_values):
    r2s = [float(r) * float(r) for r in scales]
    inv_vols = [1.0 / (4.0 / 3.0 * math.pi * float(r) ** 3) for r in scales]
    adj_ks = [min(int(k), n - 1) for k in k_values]
    kmax = max(adj_ks)
    n_scales = len(scales)

    def kernel(pts_ref, ptsT_ref, feat_ref):
        # pts_ref: (TM, 3) query rows; ptsT_ref: (3, N) all points of this batch.
        # feat_ref: (TM, S+K) packed [densities | entropies].
        dx = pts_ref[:, 0:1] - ptsT_ref[0:1, :]
        dy = pts_ref[:, 1:2] - ptsT_ref[1:2, :]
        dz = pts_ref[:, 2:3] - ptsT_ref[2:3, :]
        d2 = dx * dx + dy * dy + dz * dz                     # (TM, N), diag exactly 0

        # ---- MDVE densities (self point included, as in the reference) ----------
        for si, (r2, iv) in enumerate(zip(r2s, inv_vols)):
            cnt = jnp.sum((d2 < r2).astype(jnp.float32), axis=1, keepdims=True)
            feat_ref[:, si:si + 1] = cnt * iv

        # ---- LGEE: read-only threshold extraction on squared distances ----------
        # thr = 0 excludes the self entry (d2 == 0 exactly); each step is a single
        # compare/select + lane-reduce, no (TM, N) writes.
        thr = jnp.zeros((tm, 1), jnp.float32)
        asum = jnp.zeros((tm, 1), jnp.float32)               # running sum of d_t
        lsum = jnp.zeros((tm, 1), jnp.float32)               # running sum of d_t*log(d_t)
        snaps = {}
        for t in range(1, kmax + 1):
            m2 = jnp.min(jnp.where(d2 > thr, d2, _MASKED), axis=1, keepdims=True)
            thr = m2
            d = jnp.sqrt(m2)                                  # sqrt only on compact mins
            asum = asum + d
            lsum = lsum + d * (0.5 * jnp.log(m2))             # d*log(d) = d*0.5*log(d2)
            if t in adj_ks:
                snaps[t] = (asum, lsum)

        # ent_k = -sum_t p_t log p_t = log(A_k) - L_k / A_k
        for ki, k in enumerate(adj_ks):
            a, l = snaps[k]
            feat_ref[:, n_scales + ki:n_scales + ki + 1] = jnp.log(a) - l / a

    return kernel


# --------------------------------------------------------------------------------
# Kernel B: moment-form density gradient + F.normalize + both Linear layers (MXU).
# --------------------------------------------------------------------------------
def _make_embed_kernel(n, n_scales, n_k):
    n_f = float(n)
    eps2 = _EPS_NORM * _EPS_NORM

    def l2norm(x):  # == F.normalize(x, dim=-1): x / max(||x||, eps)
        return x * lax.rsqrt(jnp.maximum(jnp.sum(x * x, axis=1, keepdims=True), eps2))

    def kernel(feat_ref, stats_ref, wmd_ref, wmg_ref, bm_ref, wl_ref, bl_ref, out_ref):
        feat = feat_ref[...]                                  # (N, S+K)
        dens = feat[:, 0:n_scales]                            # (N, S)
        lgee = feat[:, n_scales:n_scales + n_k]               # (N, K)
        mean = stats_ref[0:1, :]                              # (1, S) per-scale mean density
        css = stats_ref[1:2, :]                               # (1, S) sum_j (d_j - mean)^2
        cd = dens - mean
        # sum_j (d_i - d_j)^2 == N*(d_i - mean)^2 + sum_j (d_j - mean)^2
        grad = jnp.sqrt(jnp.maximum(n_f * cd * cd + css, 0.0))

        # F.normalize over [densities, gradients] without a lane-concat:
        # shared inverse norm + two small MXU matmuls on the split weight.
        inv = lax.rsqrt(jnp.maximum(
            jnp.sum(dens * dens, axis=1, keepdims=True)
            + jnp.sum(grad * grad, axis=1, keepdims=True), eps2))
        mdve_emb = (jnp.dot(dens * inv, wmd_ref[...], preferred_element_type=jnp.float32)
                    + jnp.dot(grad * inv, wmg_ref[...], preferred_element_type=jnp.float32)
                    + bm_ref[...])                            # (N, H)

        linv = lax.rsqrt(jnp.maximum(jnp.sum(lgee * lgee, axis=1, keepdims=True), eps2))
        lgee_emb = (jnp.dot(lgee * linv, wl_ref[...], preferred_element_type=jnp.float32)
                    + bl_ref[...])                            # (N, H)

        out_ref[...] = l2norm(mdve_emb) + l2norm(lgee_emb)

    return kernel


# --------------------------------------------------------------------------------
# Tiling helpers (generation-aware).
# --------------------------------------------------------------------------------
def _vmem_capacity_bytes():
    try:
        return int(pltpu.get_tpu_info().vmem_capacity_bytes)
    except Exception:
        return 64 * 2 ** 20   # conservative fallback (v7x-sized)


def _pick_row_tile(n, b, vmem_capacity):
    # Budget ~3x (TM,N) f32 (d2 + a couple of fused temporaries) within 60% of VMEM,
    # and require >= 2 grid programs so both v7x TensorCores get work.
    budget = int(0.6 * vmem_capacity)
    for tm in (1024, 512, 256, 128, 64, 32, 16, 8):
        if n % tm:
            continue
        if b * (n // tm) < 2:
            continue
        if 3 * tm * n * 4 <= budget:
            return tm
    return 8 if n % 8 == 0 else n   # last resort (tiny or ragged N)


# --------------------------------------------------------------------------------
# Wrapper.
# --------------------------------------------------------------------------------
def neighbor_structure_embedding(points, wm_t, bm, wl_t, bl, *,
                                 scales, k_values=(5, 10, 25), tm=None, expand=False):
    """points: (B, N, 3) f32; wm_t: (2S, H); bm: (1, H); wl_t: (K, H); bl: (1, H)."""
    B, N, _ = points.shape
    H = wm_t.shape[1]
    S = len(scales)
    K = len(k_values)
    assert N >= 2
    assert wm_t.shape == (2 * S, H) and wl_t.shape == (K, H)

    vmem_capacity = _vmem_capacity_bytes()
    if tm is None:
        tm = _pick_row_tile(N, B, vmem_capacity)
    assert N % tm == 0 and (tm % 8 == 0 or tm == N)
    n_tiles = N // tm

    points_t = jnp.swapaxes(points, 1, 2)                       # (B, 3, N)

    adj_ks = [min(int(k), N - 1) for k in k_values]
    kmax = max(adj_ks)

    # VMEM limit: working set + double-buffered IO + slack, clamped to the chip.
    work_bytes = 3 * tm * N * 4
    io_bytes = 2 * 4 * (tm * 3 + 3 * N + tm * (S + K))
    vmem_limit = int(min(int(0.8 * vmem_capacity),
                         max(32 * 2 ** 20, work_bytes + io_bytes + (4 << 20))))

    cost = pl.CostEstimate(
        flops=B * N * (N * (8 + 2 * S + 3 * kmax) + 8 * (S + K)),
        transcendentals=B * N * (2 * kmax + 2 * K),
        bytes_accessed=B * (2 * 3 * N * 4 + N * (S + K) * 4),
    )

    # ---- Kernel A: heavy O(N^2) work, row-tiled, one packed per-point output ----
    feat = pl.pallas_call(
        _make_stats_kernel(tm, N, scales, k_values),
        out_shape=jax.ShapeDtypeStruct((B, N, S + K), jnp.float32),
        grid=(B, n_tiles),   # inner tile axis fastest -> (3,N) block re-used per batch
        in_specs=[
            pl.BlockSpec((None, tm, 3), lambda b, i: (b, i, 0)),
            pl.BlockSpec((None, 3, N), lambda b, i: (b, 0, 0)),
        ],
        out_specs=pl.BlockSpec((None, tm, S + K), lambda b, i: (b, i, 0)),
        compiler_params=pltpu.CompilerParams(
            dimension_semantics=("parallel", "parallel"),
            vmem_limit_bytes=vmem_limit),
        cost_estimate=cost,
    )(points, points_t)

    dens = feat[..., :S]                                        # (B, N, S)

    # Per-scale density moments for the gradient (tiny O(N*S) glue reduction).
    mean = jnp.mean(dens, axis=1, keepdims=True)                # (B, 1, S)
    css = jnp.sum((dens - mean) ** 2, axis=1, keepdims=True)    # (B, 1, S)
    stats = jnp.concatenate([mean, css], axis=1)                # (B, 2, S)

    # ---- Kernel B: gradient + normalize + Linear layers; tiny, full-N blocks ----
    per_point = pl.pallas_call(
        _make_embed_kernel(N, S, K),
        out_shape=jax.ShapeDtypeStruct((B, N, H), jnp.float32),
        grid=(B,),
        in_specs=[
            pl.BlockSpec((None, N, S + K), lambda b: (b, 0, 0)),
            pl.BlockSpec((None, 2, S), lambda b: (b, 0, 0)),
            pl.BlockSpec((S, H), lambda b: (0, 0)),
            pl.BlockSpec((S, H), lambda b: (0, 0)),
            pl.BlockSpec((1, H), lambda b: (0, 0)),
            pl.BlockSpec((K, H), lambda b: (0, 0)),
            pl.BlockSpec((1, H), lambda b: (0, 0)),
        ],
        out_specs=pl.BlockSpec((None, N, H), lambda b: (b, 0, 0)),
        compiler_params=pltpu.CompilerParams(
            dimension_semantics=("parallel",)),
    )(feat, stats, wm_t[:S], wm_t[S:], bm, wl_t, bl)

    if not expand:
        return per_point                                        # (B, N, H)

    # Reference: mdve/lgee embeddings expand_as(r_d_embeddings) -> (B, N, N, H);
    # this is a pure broadcast of the per-point embedding along axis 1.
    # TODO(synk): production consumers should use expand=False (or fuse this
    # broadcast into the consumer) — it writes N^2*H*4 bytes of HBM for nothing.
    assert B == 1, "expand_as semantics of the reference require batch size 1"
    return jnp.broadcast_to(per_point[:, None, :, :], (B, N, N, H))


# ---------------------------- validation helpers ---------------------------------

def _reference_forward(points, wm_t, bm, wl_t, bl, *, scales, k_values):
    """Pure-jnp transcription of the PyTorch module's forward()."""
    B, N, _ = points.shape
    diff = points[:, :, None, :] - points[:, None, :, :]
    dist = jnp.sqrt(jnp.sum(diff * diff, axis=-1))              # (B, N, N)

    dens_list, grad_list = [], []
    for r in scales:
        vol = 4.0 / 3.0 * math.pi * float(r) ** 3
        dens = jnp.sum((dist < r).astype(jnp.float32), axis=-1) / vol
        dens_list.append(dens)
        dd = dens[:, :, None] - dens[:, None, :]
        grad_list.append(jnp.sqrt(jnp.sum(dd * dd, axis=-1)))
    mdve = jnp.stack(dens_list + grad_list, axis=-1)            # (B, N, 2S)

    ents = []
    for k in [min(int(kv), N - 1) for kv in k_values]:
        knn = -lax.top_k(-dist, k + 1)[0][..., 1:]              # k smallest, self dropped
        p = knn / jnp.sum(knn, axis=-1, keepdims=True)
        ents.append(-jnp.sum(p * jnp.log(p + 1e-10), axis=-1))
    lgee = jnp.stack(ents, axis=-1)                             # (B, N, K)

    def fnorm(x):
        return x / jnp.maximum(jnp.linalg.norm(x, axis=-1, keepdims=True), 1e-12)

    mdve_emb = fnorm(mdve) @ wm_t + bm
    lgee_emb = fnorm(lgee) @ wl_t + bl
    per_point = fnorm(mdve_emb) + fnorm(lgee_emb)               # (B, N, H)
    return jnp.broadcast_to(per_point[:, None, :, :], (B, N, N, H))


if __name__ == "__main__":
    B, N, H = 1, 32, 32
    scales = (0.5, 1.0, 1.5)
    k_values = (5, 10, 25)

    key = jax.random.PRNGKey(0)
    kp, kwm, kbm, kwl, kbl = jax.random.split(key, 5)
    points = jax.random.normal(kp, (B, N, 3), dtype=jnp.float32)

    def linear_init(kw, kb, fan_in, fan_out):
        bound = 1.0 / math.sqrt(fan_in)
        w_t = jax.random.uniform(kw, (fan_in, fan_out), jnp.float32, -bound, bound)
        b = jax.random.uniform(kb, (1, fan_out), jnp.float32, -bound, bound)
        return w_t, b

    # rtdie_embedding / lgde_embedding params never influence forward's output.
    wm_t, bm = linear_init(kwm, kbm, 2 * len(scales), H)        # mdve_embedding
    wl_t, bl = linear_init(kwl, kbl, len(k_values), H)          # lgee_embedding

    fn = jax.jit(partial(neighbor_structure_embedding,
                         scales=scales, k_values=k_values, expand=True))
    out = fn(points, wm_t, bm, wl_t, bl)
    jax.block_until_ready(out)

    assert out.shape == (B, N, N, H) and out.dtype == jnp.float32
    assert bool(jnp.all(jnp.isfinite(out)))

    ref = _reference_forward(points, wm_t, bm, wl_t, bl,
                             scales=scales, k_values=k_values)
    assert bool(jnp.allclose(out, ref, atol=2e-3, rtol=2e-3)), \
        float(jnp.max(jnp.abs(out - ref)))
    print("KERNEL_OK")
</pallas_src>

<mosaic_0001>
module attributes {stable_mosaic.version = 11 : i64} {
  func.func @kernel(%arg0: i32, %arg1: i32, %arg2: memref<1x16x3xf32, #tpu.memory_space<vmem>>, %arg3: memref<1x3x32xf32, #tpu.memory_space<vmem>>, %arg4: memref<1x16x6xf32, #tpu.memory_space<vmem>>) attributes {dimension_semantics = [#tpu.dimension_semantics<parallel>, #tpu.dimension_semantics<parallel>], iteration_bounds = array<i64: 1, 2>, scalar_prefetch = 0 : i64, scratch_operands = 0 : i64, tpu.core_type = #tpu.core_type<tc>, window_params = [{transform_indices = @transform_0, window_bounds = array<i64: 1, 16, 3>}, {transform_indices = @transform_1, window_bounds = array<i64: 1, 3, 32>}, {transform_indices = @transform_2, window_bounds = array<i64: 1, 16, 6>}]} {
    %c0 = arith.constant 0 : index
    %c0_0 = arith.constant 0 : index
    %c0_1 = arith.constant 0 : index
    %0 = vector.load %arg2[%c0, %c0_0, %c0_1] : memref<1x16x3xf32, #tpu.memory_space<vmem>>, vector<1x16x1xf32>
    %1 = vector.shape_cast %0 : vector<1x16x1xf32> to vector<16x1xf32>
    %c0_2 = arith.constant 0 : index
    %c0_3 = arith.constant 0 : index
    %c0_4 = arith.constant 0 : index
    %2 = vector.load %arg3[%c0_2, %c0_3, %c0_4] : memref<1x3x32xf32, #tpu.memory_space<vmem>>, vector<1x1x32xf32>
    %3 = vector.shape_cast %2 : vector<1x1x32xf32> to vector<1x32xf32>
    %4 = vector.broadcast %1 : vector<16x1xf32> to vector<16x32xf32>
    %5 = vector.broadcast %3 : vector<1x32xf32> to vector<16x32xf32>
    %6 = arith.subf %4, %5 : vector<16x32xf32>
    %c0_5 = arith.constant 0 : index
    %c0_6 = arith.constant 0 : index
    %c1 = arith.constant 1 : index
    %7 = vector.load %arg2[%c0_5, %c0_6, %c1] : memref<1x16x3xf32, #tpu.memory_space<vmem>>, vector<1x16x1xf32>
    %8 = vector.shape_cast %7 : vector<1x16x1xf32> to vector<16x1xf32>
    %c0_7 = arith.constant 0 : index
    %c1_8 = arith.constant 1 : index
    %c0_9 = arith.constant 0 : index
    %9 = vector.load %arg3[%c0_7, %c1_8, %c0_9] : memref<1x3x32xf32, #tpu.memory_space<vmem>>, vector<1x1x32xf32>
    %10 = vector.shape_cast %9 : vector<1x1x32xf32> to vector<1x32xf32>
    %11 = vector.broadcast %8 : vector<16x1xf32> to vector<16x32xf32>
    %12 = vector.broadcast %10 : vector<1x32xf32> to vector<16x32xf32>
    %13 = arith.subf %11, %12 : vector<16x32xf32>
    %c0_10 = arith.constant 0 : index
    %c0_11 = arith.constant 0 : index
    %c2 = arith.constant 2 : index
    %14 = vector.load %arg2[%c0_10, %c0_11, %c2] : memref<1x16x3xf32, #tpu.memory_space<vmem>>, vector<1x16x1xf32>
    %15 = vector.shape_cast %14 : vector<1x16x1xf32> to vector<16x1xf32>
    %c0_12 = arith.constant 0 : index
    %c2_13 = arith.constant 2 : index
    %c0_14 = arith.constant 0 : index
    %16 = vector.load %arg3[%c0_12, %c2_13, %c0_14] : memref<1x3x32xf32, #tpu.memory_space<vmem>>, vector<1x1x32xf32>
    %17 = vector.shape_cast %16 : vector<1x1x32xf32> to vector<1x32xf32>
    %18 = vector.broadcast %15 : vector<16x1xf32> to vector<16x32xf32>
    %19 = vector.broadcast %17 : vector<1x32xf32> to vector<16x32xf32>
    %20 = arith.subf %18, %19 : vector<16x32xf32>
    %21 = arith.mulf %6, %6 : vector<16x32xf32>
    %22 = arith.mulf %13, %13 : vector<16x32xf32>
    %23 = arith.addf %21, %22 : vector<16x32xf32>
    %24 = arith.mulf %20, %20 : vector<16x32xf32>
    %25 = arith.addf %23, %24 : vector<16x32xf32>
    %cst = arith.constant 2.500000e-01 : f32
    %26 = vector.broadcast %cst : f32 to vector<16x32xf32>
    %27 = arith.cmpf olt, %25, %26 : vector<16x32xf32>
    %28 = arith.extui %27 : vector<16x32xi1> to vector<16x32xi32>
    %29 = arith.sitofp %28 : vector<16x32xi32> to vector<16x32xf32>
    %cst_15 = arith.constant dense<0.000000e+00> : vector<16xf32>
    %30 = vector.multi_reduction <add>, %29, %cst_15 [1] : vector<16x32xf32> to vector<16xf32>
    %31 = vector.shape_cast %30 : vector<16xf32> to vector<16x1xf32>
    %cst_16 = arith.constant 1.9098593 : f32
    %32 = vector.broadcast %cst_16 : f32 to vector<16x1xf32>
    %33 = arith.mulf %31, %32 : vector<16x1xf32>
    %c0_17 = arith.constant 0 : index
    %c0_18 = arith.constant 0 : index
    %c0_19 = arith.constant 0 : index
    %34 = vector.load %arg4[%c0_17, %c0_18, %c0_19] : memref<1x16x6xf32, #tpu.memory_space<vmem>>, vector<1x16x1xf32>
    %35 = vector.shape_cast %34 : vector<1x16x1xf32> to vector<16x1xf32>
    %36 = vector.shape_cast %33 : vector<16x1xf32> to vector<1x16x1xf32>
    tpu.vector_store %arg4[%c0_17, %c0_18, %c0_19], %36 {strides = array<i32>} : memref<1x16x6xf32, #tpu.memory_space<vmem>>, vector<1x16x1xf32>,
    %cst_20 = arith.constant 1.000000e+00 : f32
    %37 = vector.broadcast %cst_20 : f32 to vector<16x32xf32>
    %38 = arith.cmpf olt, %25, %37 : vector<16x32xf32>
    %39 = arith.extui %38 : vector<16x32xi1> to vector<16x32xi32>
    %40 = arith.sitofp %39 : vector<16x32xi32> to vector<16x32xf32>
    %cst_21 = arith.constant dense<0.000000e+00> : vector<16xf32>
    %41 = vector.multi_reduction <add>, %40, %cst_21 [1] : vector<16x32xf32> to vector<16xf32>
    %42 = vector.shape_cast %41 : vector<16xf32> to vector<16x1xf32>
    %cst_22 = arith.constant 0.238732412 : f32
    %43 = vector.broadcast %cst_22 : f32 to vector<16x1xf32>
    %44 = arith.mulf %42, %43 : vector<16x1xf32>
    %c0_23 = arith.constant 0 : index
    %c0_24 = arith.constant 0 : index
    %c1_25 = arith.constant 1 : index
    %45 = vector.load %arg4[%c0_23, %c0_24, %c1_25] : memref<1x16x6xf32, #tpu.memory_space<vmem>>, vector<1x16x1xf32>
    %46 = vector.shape_cast %45 : vector<1x16x1xf32> to vector<16x1xf32>
    %47 = vector.shape_cast %44 : vector<16x1xf32> to vector<1x16x1xf32>
    tpu.vector_store %arg4[%c0_23, %c0_24, %c1_25], %47 {strides = array<i32>} : memref<1x16x6xf32, #tpu.memory_space<vmem>>, vector<1x16x1xf32>,
    %cst_26 = arith.constant 2.250000e+00 : f32
    %48 = vector.broadcast %cst_26 : f32 to vector<16x32xf32>
    %49 = arith.cmpf olt, %25, %48 : vector<16x32xf32>
    %50 = arith.extui %49 : vector<16x32xi1> to vector<16x32xi32>
    %51 = arith.sitofp %50 : vector<16x32xi32> to vector<16x32xf32>
    %cst_27 = arith.constant dense<0.000000e+00> : vector<16xf32>
    %52 = vector.multi_reduction <add>, %51, %cst_27 [1] : vector<16x32xf32> to vector<16xf32>
    %53 = vector.shape_cast %52 : vector<16xf32> to vector<16x1xf32>
    %cst_28 = arith.constant 0.0707355291 : f32
    %54 = vector.broadcast %cst_28 : f32 to vector<16x1xf32>
    %55 = arith.mulf %53, %54 : vector<16x1xf32>
    %c0_29 = arith.constant 0 : index
    %c0_30 = arith.constant 0 : index
    %c2_31 = arith.constant 2 : index
    %56 = vector.load %arg4[%c0_29, %c0_30, %c2_31] : memref<1x16x6xf32, #tpu.memory_space<vmem>>, vector<1x16x1xf32>
    %57 = vector.shape_cast %56 : vector<1x16x1xf32> to vector<16x1xf32>
    %58 = vector.shape_cast %55 : vector<16x1xf32> to vector<1x16x1xf32>
    tpu.vector_store %arg4[%c0_29, %c0_30, %c2_31], %58 {strides = array<i32>} : memref<1x16x6xf32, #tpu.memory_space<vmem>>, vector<1x16x1xf32>,
    %cst_32 = arith.constant 0.000000e+00 : f32
    %59 = vector.broadcast %cst_32 : f32 to vector<16x1xf32>
    %cst_33 = arith.constant 0.000000e+00 : f32
    %60 = vector.broadcast %cst_33 : f32 to vector<16x1xf32>
    %cst_34 = arith.constant 0.000000e+00 : f32
    %61 = vector.broadcast %cst_34 : f32 to vector<16x1xf32>
    %62 = vector.broadcast %59 : vector<16x1xf32> to vector<16x32xf32>
    %63 = arith.cmpf ogt, %25, %62 : vector<16x32xf32>
    %cst_35 = arith.constant 1.000000e+30 : f32
    %64 = vector.broadcast %cst_35 : f32 to vector<16x32xf32>
    %65 = arith.select %63, %25, %64 : vector<16x32xi1>, vector<16x32xf32>
    %cst_36 = arith.constant dense<0x7F800000> : vector<16xf32>
    %66 = vector.multi_reduction <minimumf>, %65, %cst_36 [1] : vector<16x32xf32> to vector<16xf32>
    %67 = vector.shape_cast %66 : vector<16xf32> to vector<16x1xf32>
    %68 = math.sqrt %67 : vector<16x1xf32>
    %69 = arith.addf %60, %68 : vector<16x1xf32>
    %70 = math.log %67 : vector<16x1xf32>
    %cst_37 = arith.constant 5.000000e-01 : f32
    %71 = vector.broadcast %cst_37 : f32 to vector<16x1xf32>
    %72 = arith.mulf %71, %70 : vector<16x1xf32>
    %73 = arith.mulf %68, %72 : vector<16x1xf32>
    %74 = arith.addf %61, %73 : vector<16x1xf32>
    %75 = vector.broadcast %67 : vector<16x1xf32> to vector<16x32xf32>
    %76 = arith.cmpf ogt, %25, %75 : vector<16x32xf32>
    %cst_38 = arith.constant 1.000000e+30 : f32
    %77 = vector.broadcast %cst_38 : f32 to vector<16x32xf32>
    %78 = arith.select %76, %25, %77 : vector<16x32xi1>, vector<16x32xf32>
    %cst_39 = arith.constant dense<0x7F800000> : vector<16xf32>
    %79 = vector.multi_reduction <minimumf>, %78, %cst_39 [1] : vector<16x32xf32> to vector<16xf32>
    %80 = vector.shape_cast %79 : vector<16xf32> to vector<16x1xf32>
    %81 = math.sqrt %80 : vector<16x1xf32>
    %82 = arith.addf %69, %81 : vector<16x1xf32>
    %83 = math.log %80 : vector<16x1xf32>
    %cst_40 = arith.constant 5.000000e-01 : f32
    %84 = vector.broadcast %cst_40 : f32 to vector<16x1xf32>
    %85 = arith.mulf %84, %83 : vector<16x1xf32>
    %86 = arith.mulf %81, %85 : vector<16x1xf32>
    %87 = arith.addf %74, %86 : vector<16x1xf32>
    %88 = vector.broadcast %80 : vector<16x1xf32> to vector<16x32xf32>
    %89 = arith.cmpf ogt, %25, %88 : vector<16x32xf32>
    %cst_41 = arith.constant 1.000000e+30 : f32
    %90 = vector.broadcast %cst_41 : f32 to vector<16x32xf32>
    %91 = arith.select %89, %25, %90 : vector<16x32xi1>, vector<16x32xf32>
    %cst_42 = arith.constant dense<0x7F800000> : vector<16xf32>
    %92 = vector.multi_reduction <minimumf>, %91, %cst_42 [1] : vector<16x32xf32> to vector<16xf32>
    %93 = vector.shape_cast %92 : vector<16xf32> to vector<16x1xf32>
    %94 = math.sqrt %93 : vector<16x1xf32>
    %95 = arith.addf %82, %94 : vector<16x1xf32>
    %96 = math.log %93 : vector<16x1xf32>
    %cst_43 = arith.constant 5.000000e-01 : f32
    %97 = vector.broadcast %cst_43 : f32 to vector<16x1xf32>
    %98 = arith.mulf %97, %96 : vector<16x1xf32>
    %99 = arith.mulf %94, %98 : vector<16x1xf32>
    %100 = arith.addf %87, %99 : vector<16x1xf32>
    %101 = vector.broadcast %93 : vector<16x1xf32> to vector<16x32xf32>
    %102 = arith.cmpf ogt, %25, %101 : vector<16x32xf32>
    %cst_44 = arith.constant 1.000000e+30 : f32
    %103 = vector.broadcast %cst_44 : f32 to vector<16x32xf32>
    %104 = arith.select %102, %25, %103 : vector<16x32xi1>, vector<16x32xf32>
    %cst_45 = arith.constant dense<0x7F800000> : vector<16xf32>
    %105 = vector.multi_reduction <minimumf>, %104, %cst_45 [1] : vector<16x32xf32> to vector<16xf32>
    %106 = vector.shape_cast %105 : vector<16xf32> to vector<16x1xf32>
    %107 = math.sqrt %106 : vector<16x1xf32>
    %108 = arith.addf %95, %107 : vector<16x1xf32>
    %109 = math.log %106 : vector<16x1xf32>
    %cst_46 = arith.constant 5.000000e-01 : f32
    %110 = vector.broadcast %cst_46 : f32 to vector<16x1xf32>
    %111 = arith.mulf %110, %109 : vector<16x1xf32>
    %112 = arith.mulf %107, %111 : vector<16x1xf32>
    %113 = arith.addf %100, %112 : vector<16x1xf32>
    %114 = vector.broadcast %106 : vector<16x1xf32> to vector<16x32xf32>
    %115 = arith.cmpf ogt, %25, %114 : vector<16x32xf32>
    %cst_47 = arith.constant 1.000000e+30 : f32
    %116 = vector.broadcast %cst_47 : f32 to vector<16x32xf32>
    %117 = arith.select %115, %25, %116 : vector<16x32xi1>, vector<16x32xf32>
    %cst_48 = arith.constant dense<0x7F800000> : vector<16xf32>
    %118 = vector.multi_reduction <minimumf>, %117, %cst_48 [1] : vector<16x32xf32> to vector<16xf32>
    %119 = vector.shape_cast %118 : vector<16xf32> to vector<16x1xf32>
    %120 = math.sqrt %119 : vector<16x1xf32>
    %121 = arith.addf %108, %120 : vector<16x1xf32>
    %122 = math.log %119 : vector<16x1xf32>
    %cst_49 = arith.constant 5.000000e-01 : f32
    %123 = vector.broadcast %cst_49 : f32 to vector<16x1xf32>
    %124 = arith.mulf %123, %122 : vector<16x1xf32>
    %125 = arith.mulf %120, %124 : vector<16x1xf32>
    %126 = arith.addf %113, %125 : vector<16x1xf32>
    %127 = vector.broadcast %119 : vector<16x1xf32> to vector<16x32xf32>
    %128 = arith.cmpf ogt, %25, %127 : vector<16x32xf32>
    %cst_50 = arith.constant 1.000000e+30 : f32
    %129 = vector.broadcast %cst_50 : f32 to vector<16x32xf32>
    %130 = arith.select %128, %25, %129 : vector<16x32xi1>, vector<16x32xf32>
    %cst_51 = arith.constant dense<0x7F800000> : vector<16xf32>
    %131 = vector.multi_reduction <minimumf>, %130, %cst_51 [1] : vector<16x32xf32> to vector<16xf32>
    %132 = vector.shape_cast %131 : vector<16xf32> to vector<16x1xf32>
    %133 = math.sqrt %132 : vector<16x1xf32>
    %134 = arith.addf %121, %133 : vector<16x1xf32>
    %135 = math.log %132 : vector<16x1xf32>
    %cst_52 = arith.constant 5.000000e-01 : f32
    %136 = vector.broadcast %cst_52 : f32 to vector<16x1xf32>
    %137 = arith.mulf %136, %135 : vector<16x1xf32>
    %138 = arith.mulf %133, %137 : vector<16x1xf32>
    %139 = arith.addf %126, %138 : vector<16x1xf32>
    %140 = vector.broadcast %132 : vector<16x1xf32> to vector<16x32xf32>
    %141 = arith.cmpf ogt, %25, %140 : vector<16x32xf32>
    %cst_53 = arith.constant 1.000000e+30 : f32
    %142 = vector.broadcast %cst_53 : f32 to vector<16x32xf32>
    %143 = arith.select %141, %25, %142 : vector<16x32xi1>, vector<16x32xf32>
    %cst_54 = arith.constant dense<0x7F800000> : vector<16xf32>
    %144 = vector.multi_reduction <minimumf>, %143, %cst_54 [1] : vector<16x32xf32> to vector<16xf32>
    %145 = vector.shape_cast %144 : vector<16xf32> to vector<16x1xf32>
    %146 = math.sqrt %145 : vector<16x1xf32>
    %147 = arith.addf %134, %146 : vector<16x1xf32>
    %148 = math.log %145 : vector<16x1xf32>
    %cst_55 = arith.constant 5.000000e-01 : f32
    %149 = vector.broadcast %cst_55 : f32 to vector<16x1xf32>
    %150 = arith.mulf %149, %148 : vector<16x1xf32>
    %151 = arith.mulf %146, %150 : vector<16x1xf32>
    %152 = arith.addf %139, %151 : vector<16x1xf32>
    %153 = vector.broadcast %145 : vector<16x1xf32> to vector<16x32xf32>
    %154 = arith.cmpf ogt, %25, %153 : vector<16x32xf32>
    %cst_56 = arith.constant 1.000000e+30 : f32
    %155 = vector.broadcast %cst_56 : f32 to vector<16x32xf32>
    %156 = arith.select %154, %25, %155 : vector<16x32xi1>, vector<16x32xf32>
    %cst_57 = arith.constant dense<0x7F800000> : vector<16xf32>
    %157 = vector.multi_reduction <minimumf>, %156, %cst_57 [1] : vector<16x32xf32> to vector<16xf32>
    %158 = vector.shape_cast %157 : vector<16xf32> to vector<16x1xf32>
    %159 = math.sqrt %158 : vector<16x1xf32>
    %160 = arith.addf %147, %159 : vector<16x1xf32>
    %161 = math.log %158 : vector<16x1xf32>
    %cst_58 = arith.constant 5.000000e-01 : f32
    %162 = vector.broadcast %cst_58 : f32 to vector<16x1xf32>
    %163 = arith.mulf %162, %161 : vector<16x1xf32>
    %164 = arith.mulf %159, %163 : vector<16x1xf32>
    %165 = arith.addf %152, %164 : vector<16x1xf32>
    %166 = vector.broadcast %158 : vector<16x1xf32> to vector<16x32xf32>
    %167 = arith.cmpf ogt, %25, %166 : vector<16x32xf32>
    %cst_59 = arith.constant 1.000000e+30 : f32
    %168 = vector.broadcast %cst_59 : f32 to vector<16x32xf32>
    %169 = arith.select %167, %25, %168 : vector<16x32xi1>, vector<16x32xf32>
    %cst_60 = arith.constant dense<0x7F800000> : vector<16xf32>
    %170 = vector.multi_reduction <minimumf>, %169, %cst_60 [1] : vector<16x32xf32> to vector<16xf32>
    %171 = vector.shape_cast %170 : vector<16xf32> to vector<16x1xf32>
    %172 = math.sqrt %171 : vector<16x1xf32>
    %173 = arith.addf %160, %172 : vector<16x1xf32>
    %174 = math.log %171 : vector<16x1xf32>
    %cst_61 = arith.constant 5.000000e-01 : f32
    %175 = vector.broadcast %cst_61 : f32 to vector<16x1xf32>
    %176 = arith.mulf %175, %174 : vector<16x1xf32>
    %177 = arith.mulf %172, %176 : vector<16x1xf32>
    %178 = arith.addf %165, %177 : vector<16x1xf32>
    %179 = vector.broadcast %171 : vector<16x1xf32> to vector<16x32xf32>
    %180 = arith.cmpf ogt, %25, %179 : vector<16x32xf32>
    %cst_62 = arith.constant 1.000000e+30 : f32
    %181 = vector.broadcast %cst_62 : f32 to vector<16x32xf32>
    %182 = arith.select %180, %25, %181 : vector<16x32xi1>, vector<16x32xf32>
    %cst_63 = arith.constant dense<0x7F800000> : vector<16xf32>
    %183 = vector.multi_reduction <minimumf>, %182, %cst_63 [1] : vector<16x32xf32> to vector<16xf32>
    %184 = vector.shape_cast %183 : vector<16xf32> to vector<16x1xf32>
    %185 = math.sqrt %184 : vector<16x1xf32>
    %186 = arith.addf %173, %185 : vector<16x1xf32>
    %187 = math.log %184 : vector<16x1xf32>
    %cst_64 = arith.constant 5.000000e-01 : f32
    %188 = vector.broadcast %cst_64 : f32 to vector<16x1xf32>
    %189 = arith.mulf %188, %187 : vector<16x1xf32>
    %190 = arith.mulf %185, %189 : vector<16x1xf32>
    %191 = arith.addf %178, %190 : vector<16x1xf32>
    %192 = vector.broadcast %184 : vector<16x1xf32> to vector<16x32xf32>
    %193 = arith.cmpf ogt, %25, %192 : vector<16x32xf32>
    %cst_65 = arith.constant 1.000000e+30 : f32
    %194 = vector.broadcast %cst_65 : f32 to vector<16x32xf32>
    %195 = arith.select %193, %25, %194 : vector<16x32xi1>, vector<16x32xf32>
    %cst_66 = arith.constant dense<0x7F800000> : vector<16xf32>
    %196 = vector.multi_reduction <minimumf>, %195, %cst_66 [1] : vector<16x32xf32> to vector<16xf32>
    %197 = vector.shape_cast %196 : vector<16xf32> to vector<16x1xf32>
    %198 = math.sqrt %197 : vector<16x1xf32>
    %199 = arith.addf %186, %198 : vector<16x1xf32>
    %200 = math.log %197 : vector<16x1xf32>
    %cst_67 = arith.constant 5.000000e-01 : f32
    %201 = vector.broadcast %cst_67 : f32 to vector<16x1xf32>
    %202 = arith.mulf %201, %200 : vector<16x1xf32>
    %203 = arith.mulf %198, %202 : vector<16x1xf32>
    %204 = arith.addf %191, %203 : vector<16x1xf32>
    %205 = vector.broadcast %197 : vector<16x1xf32> to vector<16x32xf32>
    %206 = arith.cmpf ogt, %25, %205 : vector<16x32xf32>
    %cst_68 = arith.constant 1.000000e+30 : f32
    %207 = vector.broadcast %cst_68 : f32 to vector<16x32xf32>
    %208 = arith.select %206, %25, %207 : vector<16x32xi1>, vector<16x32xf32>
    %cst_69 = arith.constant dense<0x7F800000> : vector<16xf32>
    %209 = vector.multi_reduction <minimumf>, %208, %cst_69 [1] : vector<16x32xf32> to vector<16xf32>
    %210 = vector.shape_cast %209 : vector<16xf32> to vector<16x1xf32>
    %211 = math.sqrt %210 : vector<16x1xf32>
    %212 = arith.addf %199, %211 : vector<16x1xf32>
    %213 = math.log %210 : vector<16x1xf32>
    %cst_70 = arith.constant 5.000000e-01 : f32
    %214 = vector.broadcast %cst_70 : f32 to vector<16x1xf32>
    %215 = arith.mulf %214, %213 : vector<16x1xf32>
    %216 = arith.mulf %211, %215 : vector<16x1xf32>
    %217 = arith.addf %204, %216 : vector<16x1xf32>
    %218 = vector.broadcast %210 : vector<16x1xf32> to vector<16x32xf32>
    %219 = arith.cmpf ogt, %25, %218 : vector<16x32xf32>
    %cst_71 = arith.constant 1.000000e+30 : f32
    %220 = vector.broadcast %cst_71 : f32 to vector<16x32xf32>
    %221 = arith.select %219, %25, %220 : vector<16x32xi1>, vector<16x32xf32>
    %cst_72 = arith.constant dense<0x7F800000> : vector<16xf32>
    %222 = vector.multi_reduction <minimumf>, %221, %cst_72 [1] : vector<16x32xf32> to vector<16xf32>
    %223 = vector.shape_cast %222 : vector<16xf32> to vector<16x1xf32>
    %224 = math.sqrt %223 : vector<16x1xf32>
    %225 = arith.addf %212, %224 : vector<16x1xf32>
    %226 = math.log %223 : vector<16x1xf32>
    %cst_73 = arith.constant 5.000000e-01 : f32
    %227 = vector.broadcast %cst_73 : f32 to vector<16x1xf32>
    %228 = arith.mulf %227, %226 : vector<16x1xf32>
    %229 = arith.mulf %224, %228 : vector<16x1xf32>
    %230 = arith.addf %217, %229 : vector<16x1xf32>
    %231 = vector.broadcast %223 : vector<16x1xf32> to vector<16x32xf32>
    %232 = arith.cmpf ogt, %25, %231 : vector<16x32xf32>
    %cst_74 = arith.constant 1.000000e+30 : f32
    %233 = vector.broadcast %cst_74 : f32 to vector<16x32xf32>
    %234 = arith.select %232, %25, %233 : vector<16x32xi1>, vector<16x32xf32>
    %cst_75 = arith.constant dense<0x7F800000> : vector<16xf32>
    %235 = vector.multi_reduction <minimumf>, %234, %cst_75 [1] : vector<16x32xf32> to vector<16xf32>
    %236 = vector.shape_cast %235 : vector<16xf32> to vector<16x1xf32>
    %237 = math.sqrt %236 : vector<16x1xf32>
    %238 = arith.addf %225, %237 : vector<16x1xf32>
    %239 = math.log %236 : vector<16x1xf32>
    %cst_76 = arith.constant 5.000000e-01 : f32
    %240 = vector.broadcast %cst_76 : f32 to vector<16x1xf32>
    %241 = arith.mulf %240, %239 : vector<16x1xf32>
    %242 = arith.mulf %237, %241 : vector<16x1xf32>
    %243 = arith.addf %230, %242 : vector<16x1xf32>
    %244 = vector.broadcast %236 : vector<16x1xf32> to vector<16x32xf32>
    %245 = arith.cmpf ogt, %25, %244 : vector<16x32xf32>
    %cst_77 = arith.constant 1.000000e+30 : f32
    %246 = vector.broadcast %cst_77 : f32 to vector<16x32xf32>
    %247 = arith.select %245, %25, %246 : vector<16x32xi1>, vector<16x32xf32>
    %cst_78 = arith.constant dense<0x7F800000> : vector<16xf32>
    %248 = vector.multi_reduction <minimumf>, %247, %cst_78 [1] : vector<16x32xf32> to vector<16xf32>
    %249 = vector.shape_cast %248 : vector<16xf32> to vector<16x1xf32>
    %250 = math.sqrt %249 : vector<16x1xf32>
    %251 = arith.addf %238, %250 : vector<16x1xf32>
    %252 = math.log %249 : vector<16x1xf32>
    %cst_79 = arith.constant 5.000000e-01 : f32
    %253 = vector.broadcast %cst_79 : f32 to vector<16x1xf32>
    %254 = arith.mulf %253, %252 : vector<16x1xf32>
    %255 = arith.mulf %250, %254 : vector<16x1xf32>
    %256 = arith.addf %243, %255 : vector<16x1xf32>
    %257 = vector.broadcast %249 : vector<16x1xf32> to vector<16x32xf32>
    %258 = arith.cmpf ogt, %25, %257 : vector<16x32xf32>
    %cst_80 = arith.constant 1.000000e+30 : f32
    %259 = vector.broadcast %cst_80 : f32 to vector<16x32xf32>
    %260 = arith.select %258, %25, %259 : vector<16x32xi1>, vector<16x32xf32>
    %cst_81 = arith.constant dense<0x7F800000> : vector<16xf32>
    %261 = vector.multi_reduction <minimumf>, %260, %cst_81 [1] : vector<16x32xf32> to vector<16xf32>
    %262 = vector.shape_cast %261 : vector<16xf32> to vector<16x1xf32>
    %263 = math.sqrt %262 : vector<16x1xf32>
    %264 = arith.addf %251, %263 : vector<16x1xf32>
    %265 = math.log %262 : vector<16x1xf32>
    %cst_82 = arith.constant 5.000000e-01 : f32
    %266 = vector.broadcast %cst_82 : f32 to vector<16x1xf32>
    %267 = arith.mulf %266, %265 : vector<16x1xf32>
    %268 = arith.mulf %263, %267 : vector<16x1xf32>
    %269 = arith.addf %256, %268 : vector<16x1xf32>
    %270 = vector.broadcast %262 : vector<16x1xf32> to vector<16x32xf32>
    %271 = arith.cmpf ogt, %25, %270 : vector<16x32xf32>
    %cst_83 = arith.constant 1.000000e+30 : f32
    %272 = vector.broadcast %cst_83 : f32 to vector<16x32xf32>
    %273 = arith.select %271, %25, %272 : vector<16x32xi1>, vector<16x32xf32>
    %cst_84 = arith.constant dense<0x7F800000> : vector<16xf32>
    %274 = vector.multi_reduction <minimumf>, %273, %cst_84 [1] : vector<16x32xf32> to vector<16xf32>
    %275 = vector.shape_cast %274 : vector<16xf32> to vector<16x1xf32>
    %276 = math.sqrt %275 : vector<16x1xf32>
    %277 = arith.addf %264, %276 : vector<16x1xf32>
    %278 = math.log %275 : vector<16x1xf32>
    %cst_85 = arith.constant 5.000000e-01 : f32
    %279 = vector.broadcast %cst_85 : f32 to vector<16x1xf32>
    %280 = arith.mulf %279, %278 : vector<16x1xf32>
    %281 = arith.mulf %276, %280 : vector<16x1xf32>
    %282 = arith.addf %269, %281 : vector<16x1xf32>
    %283 = vector.broadcast %275 : vector<16x1xf32> to vector<16x32xf32>
    %284 = arith.cmpf ogt, %25, %283 : vector<16x32xf32>
    %cst_86 = arith.constant 1.000000e+30 : f32
    %285 = vector.broadcast %cst_86 : f32 to vector<16x32xf32>
    %286 = arith.select %284, %25, %285 : vector<16x32xi1>, vector<16x32xf32>
    %cst_87 = arith.constant dense<0x7F800000> : vector<16xf32>
    %287 = vector.multi_reduction <minimumf>, %286, %cst_87 [1] : vector<16x32xf32> to vector<16xf32>
    %288 = vector.shape_cast %287 : vector<16xf32> to vector<16x1xf32>
    %289 = math.sqrt %288 : vector<16x1xf32>
    %290 = arith.addf %277, %289 : vector<16x1xf32>
    %291 = math.log %288 : vector<16x1xf32>
    %cst_88 = arith.constant 5.000000e-01 : f32
    %292 = vector.broadcast %cst_88 : f32 to vector<16x1xf32>
    %293 = arith.mulf %292, %291 : vector<16x1xf32>
    %294 = arith.mulf %289, %293 : vector<16x1xf32>
    %295 = arith.addf %282, %294 : vector<16x1xf32>
    %296 = vector.broadcast %288 : vector<16x1xf32> to vector<16x32xf32>
    %297 = arith.cmpf ogt, %25, %296 : vector<16x32xf32>
    %cst_89 = arith.constant 1.000000e+30 : f32
    %298 = vector.broadcast %cst_89 : f32 to vector<16x32xf32>
    %299 = arith.select %297, %25, %298 : vector<16x32xi1>, vector<16x32xf32>
    %cst_90 = arith.constant dense<0x7F800000> : vector<16xf32>
    %300 = vector.multi_reduction <minimumf>, %299, %cst_90 [1] : vector<16x32xf32> to vector<16xf32>
    %301 = vector.shape_cast %300 : vector<16xf32> to vector<16x1xf32>
    %302 = math.sqrt %301 : vector<16x1xf32>
    %303 = arith.addf %290, %302 : vector<16x1xf32>
    %304 = math.log %301 : vector<16x1xf32>
    %cst_91 = arith.constant 5.000000e-01 : f32
    %305 = vector.broadcast %cst_91 : f32 to vector<16x1xf32>
    %306 = arith.mulf %305, %304 : vector<16x1xf32>
    %307 = arith.mulf %302, %306 : vector<16x1xf32>
    %308 = arith.addf %295, %307 : vector<16x1xf32>
    %309 = vector.broadcast %301 : vector<16x1xf32> to vector<16x32xf32>
    %310 = arith.cmpf ogt, %25, %309 : vector<16x32xf32>
    %cst_92 = arith.constant 1.000000e+30 : f32
    %311 = vector.broadcast %cst_92 : f32 to vector<16x32xf32>
    %312 = arith.select %310, %25, %311 : vector<16x32xi1>, vector<16x32xf32>
    %cst_93 = arith.constant dense<0x7F800000> : vector<16xf32>
    %313 = vector.multi_reduction <minimumf>, %312, %cst_93 [1] : vector<16x32xf32> to vector<16xf32>
    %314 = vector.shape_cast %313 : vector<16xf32> to vector<16x1xf32>
    %315 = math.sqrt %314 : vector<16x1xf32>
    %316 = arith.addf %303, %315 : vector<16x1xf32>
    %317 = math.log %314 : vector<16x1xf32>
    %cst_94 = arith.constant 5.000000e-01 : f32
    %318 = vector.broadcast %cst_94 : f32 to vector<16x1xf32>
    %319 = arith.mulf %318, %317 : vector<16x1xf32>
    %320 = arith.mulf %315, %319 : vector<16x1xf32>
    %321 = arith.addf %308, %320 : vector<16x1xf32>
    %322 = vector.broadcast %314 : vector<16x1xf32> to vector<16x32xf32>
    %323 = arith.cmpf ogt, %25, %322 : vector<16x32xf32>
    %cst_95 = arith.constant 1.000000e+30 : f32
    %324 = vector.broadcast %cst_95 : f32 to vector<16x32xf32>
    %325 = arith.select %323, %25, %324 : vector<16x32xi1>, vector<16x32xf32>
    %cst_96 = arith.constant dense<0x7F800000> : vector<16xf32>
    %326 = vector.multi_reduction <minimumf>, %325, %cst_96 [1] : vector<16x32xf32> to vector<16xf32>
    %327 = vector.shape_cast %326 : vector<16xf32> to vector<16x1xf32>
    %328 = math.sqrt %327 : vector<16x1xf32>
    %329 = arith.addf %316, %328 : vector<16x1xf32>
    %330 = math.log %327 : vector<16x1xf32>
    %cst_97 = arith.constant 5.000000e-01 : f32
    %331 = vector.broadcast %cst_97 : f32 to vector<16x1xf32>
    %332 = arith.mulf %331, %330 : vector<16x1xf32>
    %333 = arith.mulf %328, %332 : vector<16x1xf32>
    %334 = arith.addf %321, %333 : vector<16x1xf32>
    %335 = vector.broadcast %327 : vector<16x1xf32> to vector<16x32xf32>
    %336 = arith.cmpf ogt, %25, %335 : vector<16x32xf32>
    %cst_98 = arith.constant 1.000000e+30 : f32
    %337 = vector.broadcast %cst_98 : f32 to vector<16x32xf32>
    %338 = arith.select %336, %25, %337 : vector<16x32xi1>, vector<16x32xf32>
    %cst_99 = arith.constant dense<0x7F800000> : vector<16xf32>
    %339 = vector.multi_reduction <minimumf>, %338, %cst_99 [1] : vector<16x32xf32> to vector<16xf32>
    %340 = vector.shape_cast %339 : vector<16xf32> to vector<16x1xf32>
    %341 = math.sqrt %340 : vector<16x1xf32>
    %342 = arith.addf %329, %341 : vector<16x1xf32>
    %343 = math.log %340 : vector<16x1xf32>
    %cst_100 = arith.constant 5.000000e-01 : f32
    %344 = vector.broadcast %cst_100 : f32 to vector<16x1xf32>
    %345 = arith.mulf %344, %343 : vector<16x1xf32>
    %346 = arith.mulf %341, %345 : vector<16x1xf32>
    %347 = arith.addf %334, %346 : vector<16x1xf32>
    %348 = vector.broadcast %340 : vector<16x1xf32> to vector<16x32xf32>
    %349 = arith.cmpf ogt, %25, %348 : vector<16x32xf32>
    %cst_101 = arith.constant 1.000000e+30 : f32
    %350 = vector.broadcast %cst_101 : f32 to vector<16x32xf32>
    %351 = arith.select %349, %25, %350 : vector<16x32xi1>, vector<16x32xf32>
    %cst_102 = arith.constant dense<0x7F800000> : vector<16xf32>
    %352 = vector.multi_reduction <minimumf>, %351, %cst_102 [1] : vector<16x32xf32> to vector<16xf32>
    %353 = vector.shape_cast %352 : vector<16xf32> to vector<16x1xf32>
    %354 = math.sqrt %353 : vector<16x1xf32>
    %355 = arith.addf %342, %354 : vector<16x1xf32>
    %356 = math.log %353 : vector<16x1xf32>
    %cst_103 = arith.constant 5.000000e-01 : f32
    %357 = vector.broadcast %cst_103 : f32 to vector<16x1xf32>
    %358 = arith.mulf %357, %356 : vector<16x1xf32>
    %359 = arith.mulf %354, %358 : vector<16x1xf32>
    %360 = arith.addf %347, %359 : vector<16x1xf32>
    %361 = vector.broadcast %353 : vector<16x1xf32> to vector<16x32xf32>
    %362 = arith.cmpf ogt, %25, %361 : vector<16x32xf32>
    %cst_104 = arith.constant 1.000000e+30 : f32
    %363 = vector.broadcast %cst_104 : f32 to vector<16x32xf32>
    %364 = arith.select %362, %25, %363 : vector<16x32xi1>, vector<16x32xf32>
    %cst_105 = arith.constant dense<0x7F800000> : vector<16xf32>
    %365 = vector.multi_reduction <minimumf>, %364, %cst_105 [1] : vector<16x32xf32> to vector<16xf32>
    %366 = vector.shape_cast %365 : vector<16xf32> to vector<16x1xf32>
    %367 = math.sqrt %366 : vector<16x1xf32>
    %368 = arith.addf %355, %367 : vector<16x1xf32>
    %369 = math.log %366 : vector<16x1xf32>
    %cst_106 = arith.constant 5.000000e-01 : f32
    %370 = vector.broadcast %cst_106 : f32 to vector<16x1xf32>
    %371 = arith.mulf %370, %369 : vector<16x1xf32>
    %372 = arith.mulf %367, %371 : vector<16x1xf32>
    %373 = arith.addf %360, %372 : vector<16x1xf32>
    %374 = vector.broadcast %366 : vector<16x1xf32> to vector<16x32xf32>
    %375 = arith.cmpf ogt, %25, %374 : vector<16x32xf32>
    %cst_107 = arith.constant 1.000000e+30 : f32
    %376 = vector.broadcast %cst_107 : f32 to vector<16x32xf32>
    %377 = arith.select %375, %25, %376 : vector<16x32xi1>, vector<16x32xf32>
    %cst_108 = arith.constant dense<0x7F800000> : vector<16xf32>
    %378 = vector.multi_reduction <minimumf>, %377, %cst_108 [1] : vector<16x32xf32> to vector<16xf32>
    %379 = vector.shape_cast %378 : vector<16xf32> to vector<16x1xf32>
    %380 = math.sqrt %379 : vector<16x1xf32>
    %381 = arith.addf %368, %380 : vector<16x1xf32>
    %382 = math.log %379 : vector<16x1xf32>
    %cst_109 = arith.constant 5.000000e-01 : f32
    %383 = vector.broadcast %cst_109 : f32 to vector<16x1xf32>
    %384 = arith.mulf %383, %382 : vector<16x1xf32>
    %385 = arith.mulf %380, %384 : vector<16x1xf32>
    %386 = arith.addf %373, %385 : vector<16x1xf32>
    %387 = math.log %121 : vector<16x1xf32>
    %388 = arith.divf %126, %121 : vector<16x1xf32>
    %389 = arith.subf %387, %388 : vector<16x1xf32>
    %c0_110 = arith.constant 0 : index
    %c0_111 = arith.constant 0 : index
    %c3 = arith.constant 3 : index
    %390 = vector.load %arg4[%c0_110, %c0_111, %c3] : memref<1x16x6xf32, #tpu.memory_space<vmem>>, vector<1x16x1xf32>
    %391 = vector.shape_cast %390 : vector<1x16x1xf32> to vector<16x1xf32>
    %392 = vector.shape_cast %389 : vector<16x1xf32> to vector<1x16x1xf32>
    tpu.vector_store %arg4[%c0_110, %c0_111, %c3], %392 {strides = array<i32>} : memref<1x16x6xf32, #tpu.memory_space<vmem>>, vector<1x16x1xf32>,
    %393 = math.log %186 : vector<16x1xf32>
    %394 = arith.divf %191, %186 : vector<16x1xf32>
    %395 = arith.subf %393, %394 : vector<16x1xf32>
    %c0_112 = arith.constant 0 : index
    %c0_113 = arith.constant 0 : index
    %c4 = arith.constant 4 : index
    %396 = vector.load %arg4[%c0_112, %c0_113, %c4] : memref<1x16x6xf32, #tpu.memory_space<vmem>>, vector<1x16x1xf32>
    %397 = vector.shape_cast %396 : vector<1x16x1xf32> to vector<16x1xf32>
    %398 = vector.shape_cast %395 : vector<16x1xf32> to vector<1x16x1xf32>
    tpu.vector_store %arg4[%c0_112, %c0_113, %c4], %398 {strides = array<i32>} : memref<1x16x6xf32, #tpu.memory_space<vmem>>, vector<1x16x1xf32>,
    %399 = math.log %381 : vector<16x1xf32>
    %400 = arith.divf %386, %381 : vector<16x1xf32>
    %401 = arith.subf %399, %400 : vector<16x1xf32>
    %c0_114 = arith.constant 0 : index
    %c0_115 = arith.constant 0 : index
    %c5 = arith.constant 5 : index
    %402 = vector.load %arg4[%c0_114, %c0_115, %c5] : memref<1x16x6xf32, #tpu.memory_space<vmem>>, vector<1x16x1xf32>
    %403 = vector.shape_cast %402 : vector<1x16x1xf32> to vector<16x1xf32>
    %404 = vector.shape_cast %401 : vector<16x1xf32> to vector<1x16x1xf32>
    tpu.vector_store %arg4[%c0_114, %c0_115, %c5], %404 {strides = array<i32>} : memref<1x16x6xf32, #tpu.memory_space<vmem>>, vector<1x16x1xf32>,
    return
  }
  func.func @transform_0(%arg0: i32, %arg1: i32) -> (i32, i32, i32) {
    %c0_i32 = arith.constant 0 : i32
    %c0_i32_0 = arith.constant 0 : i32
    return %arg0, %arg1, %c0_i32 : i32, i32, i32
  }
  func.func @transform_1(%arg0: i32, %arg1: i32) -> (i32, i32, i32) {
    %c0_i32 = arith.constant 0 : i32
    %c0_i32_0 = arith.constant 0 : i32
    %c0_i32_1 = arith.constant 0 : i32
    return %arg0, %c0_i32, %c0_i32_0 : i32, i32, i32
  }
  func.func @transform_2(%arg0: i32, %arg1: i32) -> (i32, i32, i32) {
    %c0_i32 = arith.constant 0 : i32
    %c0_i32_0 = arith.constant 0 : i32
    return %arg0, %arg1, %c0_i32 : i32, i32, i32
  }
}

module attributes {stable_mosaic.version = 11 : i64} {
  func.func @kernel(%arg0: i32, %arg1: memref<1x32x6xf32, #tpu.memory_space<vmem>>, %arg2: memref<1x2x3xf32, #tpu.memory_space<vmem>>, %arg3: memref<3x32xf32, #tpu.memory_space<vmem>>, %arg4: memref<3x32xf32, #tpu.memory_space<vmem>>, %arg5: memref<1x32xf32, #tpu.memory_space<vmem>>, %arg6: memref<3x32xf32, #tpu.memory_space<vmem>>, %arg7: memref<1x32xf32, #tpu.memory_space<vmem>>, %arg8: memref<1x32x32xf32, #tpu.memory_space<vmem>>) attributes {dimension_semantics = [#tpu.dimension_semantics<parallel>], iteration_bounds = array<i64: 1>, scalar_prefetch = 0 : i64, scratch_operands = 0 : i64, tpu.core_type = #tpu.core_type<tc>, window_params = [{transform_indices = @transform_0, window_bounds = array<i64: 1, 32, 6>}, {transform_indices = @transform_1, window_bounds = array<i64: 1, 2, 3>}, {pipeline_mode = #tpu.pipeline_mode<synchronous>, transform_indices = @transform_2, window_bounds = array<i64: 3, 32>}, {pipeline_mode = #tpu.pipeline_mode<synchronous>, transform_indices = @transform_3, window_bounds = array<i64: 3, 32>}, {pipeline_mode = #tpu.pipeline_mode<synchronous>, transform_indices = @transform_4, window_bounds = array<i64: 1, 32>}, {pipeline_mode = #tpu.pipeline_mode<synchronous>, transform_indices = @transform_5, window_bounds = array<i64: 3, 32>}, {pipeline_mode = #tpu.pipeline_mode<synchronous>, transform_indices = @transform_6, window_bounds = array<i64: 1, 32>}, {transform_indices = @transform_7, window_bounds = array<i64: 1, 32, 32>}]} {
    %c0 = arith.constant 0 : index
    %c0_0 = arith.constant 0 : index
    %c0_1 = arith.constant 0 : index
    %0 = vector.load %arg1[%c0, %c0_0, %c0_1] : memref<1x32x6xf32, #tpu.memory_space<vmem>>, vector<1x32x6xf32>
    %1 = vector.shape_cast %0 : vector<1x32x6xf32> to vector<32x6xf32>
    %2 = vector.extract_strided_slice %1 {offsets = [0, 0], sizes = [32, 3], strides = [1, 1]} : vector<32x6xf32> to vector<32x3xf32>
    %3 = vector.extract_strided_slice %1 {offsets = [0, 3], sizes = [32, 3], strides = [1, 1]} : vector<32x6xf32> to vector<32x3xf32>
    %c0_2 = arith.constant 0 : index
    %c0_3 = arith.constant 0 : index
    %c0_4 = arith.constant 0 : index
    %4 = vector.load %arg2[%c0_2, %c0_3, %c0_4] : memref<1x2x3xf32, #tpu.memory_space<vmem>>, vector<1x1x3xf32>
    %5 = vector.shape_cast %4 : vector<1x1x3xf32> to vector<1x3xf32>
    %c0_5 = arith.constant 0 : index
    %c1 = arith.constant 1 : index
    %c0_6 = arith.constant 0 : index
    %6 = vector.load %arg2[%c0_5, %c1, %c0_6] : memref<1x2x3xf32, #tpu.memory_space<vmem>>, vector<1x1x3xf32>
    %7 = vector.shape_cast %6 : vector<1x1x3xf32> to vector<1x3xf32>
    %8 = vector.broadcast %5 : vector<1x3xf32> to vector<32x3xf32>
    %9 = arith.subf %2, %8 : vector<32x3xf32>
    %cst = arith.constant 3.200000e+01 : f32
    %10 = vector.broadcast %cst : f32 to vector<32x3xf32>
    %11 = arith.mulf %10, %9 : vector<32x3xf32>
    %12 = arith.mulf %11, %9 : vector<32x3xf32>
    %13 = vector.broadcast %7 : vector<1x3xf32> to vector<32x3xf32>
    %14 = arith.addf %12, %13 : vector<32x3xf32>
    %cst_7 = arith.constant 0.000000e+00 : f32
    %15 = vector.broadcast %cst_7 : f32 to vector<32x3xf32>
    %16 = arith.maximumf %14, %15 : vector<32x3xf32>
    %17 = math.sqrt %16 : vector<32x3xf32>
    %18 = arith.mulf %2, %2 : vector<32x3xf32>
    %cst_8 = arith.constant dense<0.000000e+00> : vector<32xf32>
    %19 = vector.multi_reduction <add>, %18, %cst_8 [1] : vector<32x3xf32> to vector<32xf32>
    %20 = vector.shape_cast %19 : vector<32xf32> to vector<32x1xf32>
    %21 = arith.mulf %17, %17 : vector<32x3xf32>
    %cst_9 = arith.constant dense<0.000000e+00> : vector<32xf32>
    %22 = vector.multi_reduction <add>, %21, %cst_9 [1] : vector<32x3xf32> to vector<32xf32>
    %23 = vector.shape_cast %22 : vector<32xf32> to vector<32x1xf32>
    %24 = arith.addf %20, %23 : vector<32x1xf32>
    %cst_10 = arith.constant 1.000000e-24 : f32
    %25 = vector.broadcast %cst_10 : f32 to vector<32x1xf32>
    %26 = arith.maximumf %24, %25 : vector<32x1xf32>
    %27 = math.rsqrt %26 : vector<32x1xf32>
    %28 = vector.broadcast %27 : vector<32x1xf32> to vector<32x3xf32>
    %29 = arith.mulf %2, %28 : vector<32x3xf32>
    %c0_11 = arith.constant 0 : index
    %c0_12 = arith.constant 0 : index
    %30 = vector.load %arg3[%c0_11, %c0_12] : memref<3x32xf32, #tpu.memory_space<vmem>>, vector<3x32xf32>
    %cst_13 = arith.constant dense<0.000000e+00> : vector<32x32xf32>
    %31 = tpu.matmul %29, %30, %cst_13 {dimension_numbers = #tpu.dot_dimension_numbers<[1], [0], [0], [1], [0, 0, 1, 1], [], []>} : vector<32x3xf32>, vector<3x32xf32>, vector<32x32xf32> -> vector<32x32xf32>
    %32 = vector.broadcast %27 : vector<32x1xf32> to vector<32x3xf32>
    %33 = arith.mulf %17, %32 : vector<32x3xf32>
    %c0_14 = arith.constant 0 : index
    %c0_15 = arith.constant 0 : index
    %34 = vector.load %arg4[%c0_14, %c0_15] : memref<3x32xf32, #tpu.memory_space<vmem>>, vector<3x32xf32>
    %cst_16 = arith.constant dense<0.000000e+00> : vector<32x32xf32>
    %35 = tpu.matmul %33, %34, %cst_16 {dimension_numbers = #tpu.dot_dimension_numbers<[1], [0], [0], [1], [0, 0, 1, 1], [], []>} : vector<32x3xf32>, vector<3x32xf32>, vector<32x32xf32> -> vector<32x32xf32>
    %36 = arith.addf %31, %35 : vector<32x32xf32>
    %c0_17 = arith.constant 0 : index
    %c0_18 = arith.constant 0 : index
    %37 = vector.load %arg5[%c0_17, %c0_18] : memref<1x32xf32, #tpu.memory_space<vmem>>, vector<1x32xf32>
    %38 = vector.broadcast %37 : vector<1x32xf32> to vector<32x32xf32>
    %39 = arith.addf %36, %38 : vector<32x32xf32>
    %40 = arith.mulf %3, %3 : vector<32x3xf32>
    %cst_19 = arith.constant dense<0.000000e+00> : vector<32xf32>
    %41 = vector.multi_reduction <add>, %40, %cst_19 [1] : vector<32x3xf32> to vector<32xf32>
    %42 = vector.shape_cast %41 : vector<32xf32> to vector<32x1xf32>
    %cst_20 = arith.constant 1.000000e-24 : f32
    %43 = vector.broadcast %cst_20 : f32 to vector<32x1xf32>
    %44 = arith.maximumf %42, %43 : vector<32x1xf32>
    %45 = math.rsqrt %44 : vector<32x1xf32>
    %46 = vector.broadcast %45 : vector<32x1xf32> to vector<32x3xf32>
    %47 = arith.mulf %3, %46 : vector<32x3xf32>
    %c0_21 = arith.constant 0 : index
    %c0_22 = arith.constant 0 : index
    %48 = vector.load %arg6[%c0_21, %c0_22] : memref<3x32xf32, #tpu.memory_space<vmem>>, vector<3x32xf32>
    %cst_23 = arith.constant dense<0.000000e+00> : vector<32x32xf32>
    %49 = tpu.matmul %47, %48, %cst_23 {dimension_numbers = #tpu.dot_dimension_numbers<[1], [0], [0], [1], [0, 0, 1, 1], [], []>} : vector<32x3xf32>, vector<3x32xf32>, vector<32x32xf32> -> vector<32x32xf32>
    %c0_24 = arith.constant 0 : index
    %c0_25 = arith.constant 0 : index
    %50 = vector.load %arg7[%c0_24, %c0_25] : memref<1x32xf32, #tpu.memory_space<vmem>>, vector<1x32xf32>
    %51 = vector.broadcast %50 : vector<1x32xf32> to vector<32x32xf32>
    %52 = arith.addf %49, %51 : vector<32x32xf32>
    %53 = arith.mulf %39, %39 : vector<32x32xf32>
    %cst_26 = arith.constant dense<0.000000e+00> : vector<32xf32>
    %54 = vector.multi_reduction <add>, %53, %cst_26 [1] : vector<32x32xf32> to vector<32xf32>
    %55 = vector.shape_cast %54 : vector<32xf32> to vector<32x1xf32>
    %cst_27 = arith.constant 1.000000e-24 : f32
    %56 = vector.broadcast %cst_27 : f32 to vector<32x1xf32>
    %57 = arith.maximumf %55, %56 : vector<32x1xf32>
    %58 = math.rsqrt %57 : vector<32x1xf32>
    %59 = vector.broadcast %58 : vector<32x1xf32> to vector<32x32xf32>
    %60 = arith.mulf %39, %59 : vector<32x32xf32>
    %61 = arith.mulf %52, %52 : vector<32x32xf32>
    %cst_28 = arith.constant dense<0.000000e+00> : vector<32xf32>
    %62 = vector.multi_reduction <add>, %61, %cst_28 [1] : vector<32x32xf32> to vector<32xf32>
    %63 = vector.shape_cast %62 : vector<32xf32> to vector<32x1xf32>
    %cst_29 = arith.constant 1.000000e-24 : f32
    %64 = vector.broadcast %cst_29 : f32 to vector<32x1xf32>
    %65 = arith.maximumf %63, %64 : vector<32x1xf32>
    %66 = math.rsqrt %65 : vector<32x1xf32>
    %67 = vector.broadcast %66 : vector<32x1xf32> to vector<32x32xf32>
    %68 = arith.mulf %52, %67 : vector<32x32xf32>
    %69 = arith.addf %60, %68 : vector<32x32xf32>
    %c0_30 = arith.constant 0 : index
    %c0_31 = arith.constant 0 : index
    %c0_32 = arith.constant 0 : index
    %70 = vector.load %arg8[%c0_30, %c0_31, %c0_32] : memref<1x32x32xf32, #tpu.memory_space<vmem>>, vector<1x32x32xf32>
    %71 = vector.shape_cast %70 : vector<1x32x32xf32> to vector<32x32xf32>
    %72 = vector.shape_cast %69 : vector<32x32xf32> to vector<1x32x32xf32>
    tpu.vector_store %arg8[%c0_30, %c0_31, %c0_32], %72 {strides = array<i32>} : memref<1x32x32xf32, #tpu.memory_space<vmem>>, vector<1x32x32xf32>,
    return
  }
  func.func @transform_0(%arg0: i32) -> (i32, i32, i32) {
    %c0_i32 = arith.constant 0 : i32
    %c0_i32_0 = arith.constant 0 : i32
    %c0_i32_1 = arith.constant 0 : i32
    return %arg0, %c0_i32, %c0_i32_0 : i32, i32, i32
  }
  func.func @transform_1(%arg0: i32) -> (i32, i32, i32) {
    %c0_i32 = arith.constant 0 : i32
    %c0_i32_0 = arith.constant 0 : i32
    %c0_i32_1 = arith.constant 0 : i32
    return %arg0, %c0_i32, %c0_i32_0 : i32, i32, i32
  }
  func.func @transform_2(%arg0: i32) -> (i32, i32) {
    %c0_i32 = arith.constant 0 : i32
    %c0_i32_0 = arith.constant 0 : i32
    %c0_i32_1 = arith.constant 0 : i32
    return %c0_i32, %c0_i32_0 : i32, i32
  }
  func.func @transform_3(%arg0: i32) -> (i32, i32) {
    %c0_i32 = arith.constant 0 : i32
    %c0_i32_0 = arith.constant 0 : i32
    %c0_i32_1 = arith.constant 0 : i32
    return %c0_i32, %c0_i32_0 : i32, i32
  }
  func.func @transform_4(%arg0: i32) -> (i32, i32) {
    %c0_i32 = arith.constant 0 : i32
    %c0_i32_0 = arith.constant 0 : i32
    %c0_i32_1 = arith.constant 0 : i32
    return %c0_i32, %c0_i32_0 : i32, i32
  }
  func.func @transform_5(%arg0: i32) -> (i32, i32) {
    %c0_i32 = arith.constant 0 : i32
    %c0_i32_0 = arith.constant 0 : i32
    %c0_i32_1 = arith.constant 0 : i32
    return %c0_i32, %c0_i32_0 : i32, i32
  }
  func.func @transform_6(%arg0: i32) -> (i32, i32) {
    %c0_i32 = arith.constant 0 : i32
    %c0_i32_0 = arith.constant 0 : i32
    %c0_i32_1 = arith.constant 0 : i32
    return %c0_i32, %c0_i32_0 : i32, i32
  }
  func.func @transform_7(%arg0: i32) -> (i32, i32, i32) {
    %c0_i32 = arith.constant 0 : i32
    %c0_i32_0 = arith.constant 0 : i32
    %c0_i32_1 = arith.constant 0 : i32
    return %arg0, %c0_i32, %c0_i32_0 : i32, i32, i32
  }
}

</mosaic_0001>

<llo_original>
// kernel: neighbor_structure_embedding.3
$region0: #{neighbor_structure_embedding.3}
  #allocation0 [shape = 'u32[]', space=smem, size = 0x4, offset = 0x4, fixed_abs, tag = 'smem constant byte address 0x4 - core index']
  #allocation1 [shape = 'u32[72,128]{1,0:T(1,128)}', space=vmem, size = 0x9000, scoped, tag = 'internal scratch']
  %s0 = inlined_call_operand.vmem [shape: f32[1,32,6], index: 0, kind: input, shape index: {}]
  %s1 = inlined_call_operand.vmem [shape: f32[1,2,3], index: 1, kind: input, shape index: {}]
  %s2 = inlined_call_operand.vmem [shape: f32[3,32], index: 2, kind: input, shape index: {}]
  %s3 = inlined_call_operand.vmem [shape: f32[3,32], index: 3, kind: input, shape index: {}]
  %s4 = inlined_call_operand.vmem [shape: f32[1,32], index: 4, kind: input, shape index: {}]
  %s5 = inlined_call_operand.vmem [shape: f32[3,32], index: 5, kind: input, shape index: {}]
  %s6 = inlined_call_operand.vmem [shape: f32[1,32], index: 6, kind: input, shape index: {}]
  %s7 = inlined_call_operand.vmem [shape: f32[1,32,32], index: 7, kind: output, shape index: {}]
  %s8 = sld [smem:[#allocation0]]
  $region38: #{neighbor_structure_embedding.3} parent=0
    _
  %s10 = ssub.s32 1, %s8
  %s11 = scalar_select 0, %s10, %s8
  // Predicated region
  $region2: #{neighbor_structure_embedding.3} parent=0 // pred_check
    _
  $region3: #{neighbor_structure_embedding.3} parent=0 // pred_check_branch
    %13 = sbr.rel (0) target = $region5
  $region4: #{neighbor_structure_embedding.3} parent=0 // pred_region
    _
  $region5: #{neighbor_structure_embedding.3} parent=0 // pred_fallthru
    _
  // Predicated region
  $region6: #{neighbor_structure_embedding.3} parent=0 // pred_check
    _
  $region7: #{neighbor_structure_embedding.3} parent=0 // pred_check_branch
    %15 = sbr.rel (0) target = $region9
  $region8: #{neighbor_structure_embedding.3} parent=0 // pred_region
    _
  $region9: #{neighbor_structure_embedding.3} parent=0 // pred_fallthru
    _
  // Predicated region
  $region10: #{neighbor_structure_embedding.3} parent=0 // pred_check
    _
  $region11: #{neighbor_structure_embedding.3} parent=0 // pred_check_branch
    %17 = sbr.rel (0) target = $region13
  $region12: #{neighbor_structure_embedding.3} parent=0 // pred_region
    _
  $region13: #{neighbor_structure_embedding.3} parent=0 // pred_fallthru
    _
  // Predicated region
  $region14: #{neighbor_structure_embedding.3} parent=0 // pred_check
    _
  $region15: #{neighbor_structure_embedding.3} parent=0 // pred_check_branch
    %19 = sbr.rel (0) target = $region17
  $region16: #{neighbor_structure_embedding.3} parent=0 // pred_region
    _
  $region17: #{neighbor_structure_embedding.3} parent=0 // pred_fallthru
    _
  // Predicated region
  $region18: #{neighbor_structure_embedding.3} parent=0 // pred_check
    _
  $region19: #{neighbor_structure_embedding.3} parent=0 // pred_check_branch
    %21 = sbr.rel (0) target = $region21
  $region20: #{neighbor_structure_embedding.3} parent=0 // pred_region
    _
  $region21: #{neighbor_structure_embedding.3} parent=0 // pred_fallthru
    _
  // Predicated region
  $region22: #{neighbor_structure_embedding.3} parent=0 // pred_check
    _
  $region23: #{neighbor_structure_embedding.3} parent=0 // pred_check_branch
    %23 = sbr.rel (0) target = $region25
  $region24: #{neighbor_structure_embedding.3} parent=0 // pred_region
    _
  $region25: #{neighbor_structure_embedding.3} parent=0 // pred_fallthru
    _
  // Predicated region
  $region26: #{neighbor_structure_embedding.3} parent=0 // pred_check
    _
  $region27: #{neighbor_structure_embedding.3} parent=0 // pred_check_branch
    %25 = sbr.rel (0) target = $region29
  $region28: #{neighbor_structure_embedding.3} parent=0 // pred_region
    _
  $region29: #{neighbor_structure_embedding.3} parent=0 // pred_fallthru
    _
  %v26 = vld [vmem:[%s0] sm:$0xff]
  %v27 = vld [vmem:[%s0 + $0x8] sm:$0xff]
  %v28 = vld [vmem:[%s0 + $0x10] sm:$0xff]
  %v29 = vld [vmem:[%s0 + $0x18] sm:$0xff]
  %v30 = vld [vmem:[%s1] sm:$0x1]
  %v31 = vld [vmem:[%s1 + $0x1] sm:$0x1]
  %v32 = vperm.slane %v30, 0
  %v33 = vsub.f32 %v26, %v32
  %v34 = vsub.f32 %v27, %v32
  %v35 = vsub.f32 %v28, %v32
  %v36 = vsub.f32 %v29, %v32
  %v37 = vmul.f32 %v33, 32.0
  %v38 = vmul.f32 %v34, 32.0
  %v39 = vmul.f32 %v35, 32.0
  %v40 = vmul.f32 %v36, 32.0
  %v41 = vmul.f32 %v37, %v33
  %v42 = vmul.f32 %v38, %v34
  %v43 = vmul.f32 %v39, %v35
  %v44 = vmul.f32 %v40, %v36
  %v45 = vperm.slane %v31, 0
  %v46 = vadd.f32 %v41, %v45
  %v47 = vadd.f32 %v42, %v45
  %v48 = vadd.f32 %v43, %v45
  %v49 = vadd.f32 %v44, %v45
  %v50 = vmax.f32 %v46, 0.0
  %v51 = vmax.f32 %v47, 0.0
  %v52 = vmax.f32 %v48, 0.0
  %v53 = vmax.f32 %v49, 0.0
  %v54 = vrsqrt.pop %v50
  %v55 = vmul.f32 %v54, %v50
  %v56 = vmul.f32 %v55, %v54
  %v57 = vmul.f32 0.5, %v56
  %v58 = vsub.f32 1.5, %v57
  %v59 = vmul.f32 %v54, %v58
  %v60 = vmul.f32 %v50, %v59
  %vm61 = vcmp.eq.f32.partialorder %v50, inf
  %v62 = vsel %vm61, %v50, %v60
  %vm63 = vcmp.eq.f32.partialorder %v50, 0.0
  %v64 = vand.u32 %v50, 2147483648
  %v65 = vsel %vm63, %v64, %v62
  %v66 = vrsqrt.pop %v51
  %v67 = vmul.f32 %v66, %v51
  %v68 = vmul.f32 %v67, %v66
  %v69 = vmul.f32 0.5, %v68
  %v70 = vsub.f32 1.5, %v69
  %v71 = vmul.f32 %v66, %v70
  %v72 = vmul.f32 %v51, %v71
  %vm73 = vcmp.eq.f32.partialorder %v51, inf
  %v74 = vsel %vm73, %v51, %v72
  %vm75 = vcmp.eq.f32.partialorder %v51, 0.0
  %v76 = vand.u32 %v51, 2147483648
  %v77 = vsel %vm75, %v76, %v74
  %v78 = vrsqrt.pop %v52
  %v79 = vmul.f32 %v78, %v52
  %v80 = vmul.f32 %v79, %v78
  %v81 = vmul.f32 0.5, %v80
  %v82 = vsub.f32 1.5, %v81
  %v83 = vmul.f32 %v78, %v82
  %v84 = vmul.f32 %v52, %v83
  %vm85 = vcmp.eq.f32.partialorder %v52, inf
  %v86 = vsel %vm85, %v52, %v84
  %vm87 = vcmp.eq.f32.partialorder %v52, 0.0
  %v88 = vand.u32 %v52, 2147483648
  %v89 = vsel %vm87, %v88, %v86
  %v90 = vrsqrt.pop %v53
  %v91 = vmul.f32 %v90, %v53
  %v92 = vmul.f32 %v91, %v90
  %v93 = vmul.f32 0.5, %v92
  %v94 = vsub.f32 1.5, %v93
  %v95 = vmul.f32 %v90, %v94
  %v96 = vmul.f32 %v53, %v95
  %vm97 = vcmp.eq.f32.partialorder %v53, inf
  %v98 = vsel %vm97, %v53, %v96
  %vm99 = vcmp.eq.f32.partialorder %v53, 0.0
  %v100 = vand.u32 %v53, 2147483648
  %v101 = vsel %vm99, %v100, %v98
  %v102 = vmul.f32 %v26, %v26
  %v103 = vmul.f32 %v27, %v27
  %v104 = vmul.f32 %v28, %v28
  %v105 = vmul.f32 %v29, %v29
  %vm106 = vcmask 23552
  %v107 = vsel %vm106, %v102, 0.0
  %108 = vadd.xlane.f32.xlu0 %v107
  %v109 = vpop.xlane.xlu0 %108
  %v110 = vsel %vm106, %v103, 0.0
  %111 = vadd.xlane.f32.xlu0 %v110
  %v112 = vpop.xlane.xlu0 %111
  %v113 = vsel %vm106, %v104, 0.0
  %114 = vadd.xlane.f32.xlu0 %v113
  %v115 = vpop.xlane.xlu0 %114
  %v116 = vsel %vm106, %v105, 0.0
  %117 = vadd.xlane.f32.xlu0 %v116
  %v118 = vpop.xlane.xlu0 %117
  %v119 = vmul.f32 %v65, %v65
  %v120 = vmul.f32 %v77, %v77
  %v121 = vmul.f32 %v89, %v89
  %v122 = vmul.f32 %v101, %v101
  %v123 = vsel %vm106, %v119, 0.0
  %124 = vadd.xlane.f32.xlu0 %v123
  %v125 = vpop.xlane.xlu0 %124
  %v126 = vsel %vm106, %v120, 0.0
  %127 = vadd.xlane.f32.xlu0 %v126
  %v128 = vpop.xlane.xlu0 %127
  %v129 = vsel %vm106, %v121, 0.0
  %130 = vadd.xlane.f32.xlu0 %v129
  %v131 = vpop.xlane.xlu0 %130
  %v132 = vsel %vm106, %v122, 0.0
  %133 = vadd.xlane.f32.xlu0 %v132
  %v134 = vpop.xlane.xlu0 %133
  %v135 = vadd.f32 %v109, %v125
  %v136 = vadd.f32 %v112, %v128
  %v137 = vadd.f32 %v115, %v131
  %v138 = vadd.f32 %v118, %v134
  %v139 = vmax.f32 %v135, 1e-24
  %v140 = vmax.f32 %v136, 1e-24
  %v141 = vmax.f32 %v137, 1e-24
  %v142 = vmax.f32 %v138, 1e-24
  %v143 = vrsqrt.pop %v139
  %v144 = vmul.f32 %v143, %v139
  %v145 = vmul.f32 %v144, %v143
  %v146 = vmul.f32 0.5, %v145
  %v147 = vsub.f32 1.5, %v146
  %v148 = vmul.f32 %v143, %v147
  %vm149 = vweird.f32 %v139
  %vm150 = vweird.f32 %v143
  %vm151 = vmor %vm149, %vm150
  %v152 = vsel %vm151, %v143, %v148
  %v153 = vrsqrt.pop %v140
  %v154 = vmul.f32 %v153, %v140
  %v155 = vmul.f32 %v154, %v153
  %v156 = vmul.f32 0.5, %v155
  %v157 = vsub.f32 1.5, %v156
  %v158 = vmul.f32 %v153, %v157
  %vm159 = vweird.f32 %v140
  %vm160 = vweird.f32 %v153
  %vm161 = vmor %vm159, %vm160
  %v162 = vsel %vm161, %v153, %v158
  %v163 = vrsqrt.pop %v141
  %v164 = vmul.f32 %v163, %v141
  %v165 = vmul.f32 %v164, %v163
  %v166 = vmul.f32 0.5, %v165
  %v167 = vsub.f32 1.5, %v166
  %v168 = vmul.f32 %v163, %v167
  %vm169 = vweird.f32 %v141
  %vm170 = vweird.f32 %v163
  %vm171 = vmor %vm169, %vm170
  %v172 = vsel %vm171, %v163, %v168
  %v173 = vrsqrt.pop %v142
  %v174 = vmul.f32 %v173, %v142
  %v175 = vmul.f32 %v174, %v173
  %v176 = vmul.f32 0.5, %v175
  %v177 = vsub.f32 1.5, %v176
  %v178 = vmul.f32 %v173, %v177
  %vm179 = vweird.f32 %v142
  %vm180 = vweird.f32 %v173
  %vm181 = vmor %vm179, %vm180
  %v182 = vsel %vm181, %v173, %v178
  %v183 = vmul.f32 %v26, %v152
  %v184 = vmul.f32 %v27, %v162
  %v185 = vmul.f32 %v28, %v172
  %v186 = vmul.f32 %v29, %v182
  %v187 = vld [vmem:[%s2] sm:$0x7]
  %v188 = vmul.f32 %v65, %v152
  %v189 = vmul.f32 %v77, %v162
  %v190 = vmul.f32 %v89, %v172
  %v191 = vmul.f32 %v101, %v182
  %v192 = vld [vmem:[%s3] sm:$0x7]
  %v194 = vsel %vm106, %v188, 0
  %v197 = vsel %vm106, %v189, 0
  %v200 = vsel %vm106, %v190, 0
  %v203 = vsel %vm106, %v191, 0
  %vm205 = vcmask 1042432
  %v207 = vsel %vm205, %v192, 0
  %209 = vmatpush.msra.mxu0 0.0
  %210 = vmatpush.msra.mxu0 0.0
  %211 = vmatpush.msra.mxu0 0.0
  %212 = vmatpush.msra.mxu0 0.0
  %213 = vmatpush.msra.mxu0 0.0
  %214 = vmatpush.msra.mxu0 0.0
  %215 = vmatpush.msra.mxu0 0.0
  %216 = vmatpush.msra.mxu0 0.0
  %217 = vmatpush.msra.mxu0 0.0
  %218 = vmatpush.msra.mxu0 0.0
  %219 = vmatpush.msra.mxu0 0.0
  %220 = vmatpush.msra.mxu0 0.0
  %221 = vmatpush.msra.mxu0 0.0
  %222 = vmatpush.msra.mxu0 0.0
  %223 = vmatpush.msra.mxu0 0.0
  %224 = vmatpush.msra.mxu0 %v207
  %225 = vmatmul.f32.gmra.mxu0 %v194
  %v226 = vpop.f32.mrf.mxu0
  %v227 = vadd.f32 0.0, %v226
  %228 = vmatmul.f32.gmra.mxu0 %v197
  %v229 = vpop.f32.mrf.mxu0
  %v230 = vadd.f32 0.0, %v229
  %231 = vmatmul.f32.gmra.mxu0 %v200
  %v232 = vpop.f32.mrf.mxu0
  %v233 = vadd.f32 0.0, %v232
  %234 = vmatmul.f32.gmra.mxu0 %v203
  %v235 = vpop.f32.mrf.mxu0
  %v236 = vadd.f32 0.0, %v235
  %237 = vdwg.mxu0
  %v239 = vsel %vm106, %v183, 0
  %v242 = vsel %vm106, %v184, 0
  %v245 = vsel %vm106, %v185, 0
  %v248 = vsel %vm106, %v186, 0
  %v251 = vsel %vm205, %v187, 0
  %253 = vmatpush.msra.mxu0 0.0
  %254 = vmatpush.msra.mxu0 0.0
  %255 = vmatpush.msra.mxu0 0.0
  %256 = vmatpush.msra.mxu0 0.0
  %257 = vmatpush.msra.mxu0 0.0
  %258 = vmatpush.msra.mxu0 0.0
  %259 = vmatpush.msra.mxu0 0.0
  %260 = vmatpush.msra.mxu0 0.0
  %261 = vmatpush.msra.mxu0 0.0
  %262 = vmatpush.msra.mxu0 0.0
  %263 = vmatpush.msra.mxu0 0.0
  %264 = vmatpush.msra.mxu0 0.0
  %265 = vmatpush.msra.mxu0 0.0
  %266 = vmatpush.msra.mxu0 0.0
  %267 = vmatpush.msra.mxu0 0.0
  %268 = vmatpush.msra.mxu0 %v251
  %269 = vmatmul.f32.gmra.mxu0 %v239
  %v270 = vpop.f32.mrf.mxu0
  %v271 = vadd.f32 %v227, %v270
  %272 = vmatmul.f32.gmra.mxu0 %v242
  %v273 = vpop.f32.mrf.mxu0
  %v274 = vadd.f32 %v230, %v273
  %275 = vmatmul.f32.gmra.mxu0 %v245
  %v276 = vpop.f32.mrf.mxu0
  %v277 = vadd.f32 %v233, %v276
  %278 = vmatmul.f32.gmra.mxu0 %v248
  %v279 = vpop.f32.mrf.mxu0
  %v280 = vadd.f32 %v236, %v279
  %281 = vdwg.mxu0
  %v282 = vld [vmem:[%s4] sm:$0x1]
  %v284 = vperm.slane %v282, 0
  %v286 = vadd.f32 %v271, %v284
  %v287 = vadd.f32 %v274, %v284
  %v288 = vadd.f32 %v277, %v284
  %v289 = vadd.f32 %v280, %v284
  %294 = vrot.lane.b32.xlu0 %v102, 125
  %v295 = vpop.permute.xlu0 %294
  %296 = vrot.lane.b32.xlu0 %v103, 125
  %v297 = vpop.permute.xlu0 %296
  %298 = vrot.lane.b32.xlu0 %v104, 125
  %v299 = vpop.permute.xlu0 %298
  %300 = vrot.lane.b32.xlu0 %v105, 125
  %v301 = vpop.permute.xlu0 %300
  %v306 = vsel %vm106, %v295, 0.0
  %307 = vadd.xlane.f32.xlu0 %v306
  %v308 = vpop.xlane.xlu0 %307
  %v309 = vsel %vm106, %v297, 0.0
  %310 = vadd.xlane.f32.xlu0 %v309
  %v311 = vpop.xlane.xlu0 %310
  %v312 = vsel %vm106, %v299, 0.0
  %313 = vadd.xlane.f32.xlu0 %v312
  %v314 = vpop.xlane.xlu0 %313
  %v315 = vsel %vm106, %v301, 0.0
  %316 = vadd.xlane.f32.xlu0 %v315
  %v317 = vpop.xlane.xlu0 %316
  %v318 = vmax.f32 %v308, 1e-24
  %v319 = vmax.f32 %v311, 1e-24
  %v320 = vmax.f32 %v314, 1e-24
  %v321 = vmax.f32 %v317, 1e-24
  %v322 = vrsqrt.pop %v318
  %v323 = vmul.f32 %v322, %v318
  %v324 = vmul.f32 %v323, %v322
  %v325 = vmul.f32 0.5, %v324
  %v326 = vsub.f32 1.5, %v325
  %v327 = vmul.f32 %v322, %v326
  %vm328 = vweird.f32 %v318
  %vm329 = vweird.f32 %v322
  %vm330 = vmor %vm328, %vm329
  %v331 = vsel %vm330, %v322, %v327
  %v332 = vrsqrt.pop %v319
  %v333 = vmul.f32 %v332, %v319
  %v334 = vmul.f32 %v333, %v332
  %v335 = vmul.f32 0.5, %v334
  %v336 = vsub.f32 1.5, %v335
  %v337 = vmul.f32 %v332, %v336
  %vm338 = vweird.f32 %v319
  %vm339 = vweird.f32 %v332
  %vm340 = vmor %vm338, %vm339
  %v341 = vsel %vm340, %v332, %v337
  %v342 = vrsqrt.pop %v320
  %v343 = vmul.f32 %v342, %v320
  %v344 = vmul.f32 %v343, %v342
  %v345 = vmul.f32 0.5, %v344
  %v346 = vsub.f32 1.5, %v345
  %v347 = vmul.f32 %v342, %v346
  %vm348 = vweird.f32 %v320
  %vm349 = vweird.f32 %v342
  %vm350 = vmor %vm348, %vm349
  %v351 = vsel %vm350, %v342, %v347
  %v352 = vrsqrt.pop %v321
  %v353 = vmul.f32 %v352, %v321
  %v354 = vmul.f32 %v353, %v352
  %v355 = vmul.f32 0.5, %v354
  %v356 = vsub.f32 1.5, %v355
  %v357 = vmul.f32 %v352, %v356
  %vm358 = vweird.f32 %v321
  %vm359 = vweird.f32 %v352
  %vm360 = vmor %vm358, %vm359
  %v361 = vsel %vm360, %v352, %v357
  %v362 = vmul.f32 %v26, %v331
  %v363 = vmul.f32 %v27, %v341
  %v364 = vmul.f32 %v28, %v351
  %v365 = vmul.f32 %v29, %v361
  %v366 = vld [vmem:[%s5] sm:$0x7]
  %v367 = vld [vmem:[%s6] sm:$0x1]
  %v369 = vperm.slane %v367, 0
  %375 = vrot.lane.b32.xlu0 %v362, 125
  %v376 = vpop.permute.xlu0 %375
  %377 = vrot.lane.b32.xlu0 %v363, 125
  %v378 = vpop.permute.xlu0 %377
  %379 = vrot.lane.b32.xlu0 %v364, 125
  %v380 = vpop.permute.xlu0 %379
  %381 = vrot.lane.b32.xlu0 %v365, 125
  %v382 = vpop.permute.xlu0 %381
  %v383 = vsel %vm106, %v376, 0
  %v385 = vsel %vm106, %v378, 0
  %v387 = vsel %vm106, %v380, 0
  %v389 = vsel %vm106, %v382, 0
  %v392 = vsel %vm205, %v366, 0
  %394 = vmatpush.msra.mxu0 0.0
  %395 = vmatpush.msra.mxu0 0.0
  %396 = vmatpush.msra.mxu0 0.0
  %397 = vmatpush.msra.mxu0 0.0
  %398 = vmatpush.msra.mxu0 0.0
  %399 = vmatpush.msra.mxu0 0.0
  %400 = vmatpush.msra.mxu0 0.0
  %401 = vmatpush.msra.mxu0 0.0
  %402 = vmatpush.msra.mxu0 0.0
  %403 = vmatpush.msra.mxu0 0.0
  %404 = vmatpush.msra.mxu0 0.0
  %405 = vmatpush.msra.mxu0 0.0
  %406 = vmatpush.msra.mxu0 0.0
  %407 = vmatpush.msra.mxu0 0.0
  %408 = vmatpush.msra.mxu0 0.0
  %409 = vmatpush.msra.mxu0 %v392
  %410 = vmatmul.f32.gmra.mxu0 %v383
  %v411 = vpop.f32.mrf.mxu0
  %v412 = vadd.f32 %v369, %v411
  %413 = vmatmul.f32.gmra.mxu0 %v385
  %v414 = vpop.f32.mrf.mxu0
  %v415 = vadd.f32 %v369, %v414
  %416 = vmatmul.f32.gmra.mxu0 %v387
  %v417 = vpop.f32.mrf.mxu0
  %v418 = vadd.f32 %v369, %v417
  %419 = vmatmul.f32.gmra.mxu0 %v389
  %v420 = vpop.f32.mrf.mxu0
  %v421 = vadd.f32 %v369, %v420
  %422 = vdwg.mxu0
  %v423 = vmul.f32 %v286, %v286
  %v424 = vmul.f32 %v287, %v287
  %v425 = vmul.f32 %v288, %v288
  %v426 = vmul.f32 %v289, %v289
  %vm427 = vcmask 261120
  %v428 = vsel %vm427, %v423, 0.0
  %429 = vadd.xlane.f32.xlu0 %v428
  %v430 = vpop.xlane.xlu0 %429
  %v431 = vsel %vm427, %v424, 0.0
  %432 = vadd.xlane.f32.xlu0 %v431
  %v433 = vpop.xlane.xlu0 %432
  %v434 = vsel %vm427, %v425, 0.0
  %435 = vadd.xlane.f32.xlu0 %v434
  %v436 = vpop.xlane.xlu0 %435
  %v437 = vsel %vm427, %v426, 0.0
  %438 = vadd.xlane.f32.xlu0 %v437
  %v439 = vpop.xlane.xlu0 %438
  %v440 = vmax.f32 %v430, 1e-24
  %v441 = vmax.f32 %v433, 1e-24
  %v442 = vmax.f32 %v436, 1e-24
  %v443 = vmax.f32 %v439, 1e-24
  %v444 = vrsqrt.pop %v440
  %v445 = vmul.f32 %v444, %v440
  %v446 = vmul.f32 %v445, %v444
  %v447 = vmul.f32 0.5, %v446
  %v448 = vsub.f32 1.5, %v447
  %v449 = vmul.f32 %v444, %v448
  %vm450 = vweird.f32 %v440
  %vm451 = vweird.f32 %v444
  %vm452 = vmor %vm450, %vm451
  %v453 = vsel %vm452, %v444, %v449
  %v454 = vrsqrt.pop %v441
  %v455 = vmul.f32 %v454, %v441
  %v456 = vmul.f32 %v455, %v454
  %v457 = vmul.f32 0.5, %v456
  %v458 = vsub.f32 1.5, %v457
  %v459 = vmul.f32 %v454, %v458
  %vm460 = vweird.f32 %v441
  %vm461 = vweird.f32 %v454
  %vm462 = vmor %vm460, %vm461
  %v463 = vsel %vm462, %v454, %v459
  %v464 = vrsqrt.pop %v442
  %v465 = vmul.f32 %v464, %v442
  %v466 = vmul.f32 %v465, %v464
  %v467 = vmul.f32 0.5, %v466
  %v468 = vsub.f32 1.5, %v467
  %v469 = vmul.f32 %v464, %v468
  %vm470 = vweird.f32 %v442
  %vm471 = vweird.f32 %v464
  %vm472 = vmor %vm470, %vm471
  %v473 = vsel %vm472, %v464, %v469
  %v474 = vrsqrt.pop %v443
  %v475 = vmul.f32 %v474, %v443
  %v476 = vmul.f32 %v475, %v474
  %v477 = vmul.f32 0.5, %v476
  %v478 = vsub.f32 1.5, %v477
  %v479 = vmul.f32 %v474, %v478
  %vm480 = vweird.f32 %v443
  %vm481 = vweird.f32 %v474
  %vm482 = vmor %vm480, %vm481
  %v483 = vsel %vm482, %v474, %v479
  %v484 = vmul.f32 %v286, %v453
  %v485 = vmul.f32 %v287, %v463
  %v486 = vmul.f32 %v288, %v473
  %v487 = vmul.f32 %v289, %v483
  %v488 = vmul.f32 %v412, %v412
  %v489 = vmul.f32 %v415, %v415
  %v490 = vmul.f32 %v418, %v418
  %v491 = vmul.f32 %v421, %v421
  %v492 = vsel %vm427, %v488, 0.0
  %493 = vadd.xlane.f32.xlu0 %v492
  %v494 = vpop.xlane.xlu0 %493
  %v495 = vsel %vm427, %v489, 0.0
  %496 = vadd.xlane.f32.xlu0 %v495
  %v497 = vpop.xlane.xlu0 %496
  %v498 = vsel %vm427, %v490, 0.0
  %499 = vadd.xlane.f32.xlu0 %v498
  %v500 = vpop.xlane.xlu0 %499
  %v501 = vsel %vm427, %v491, 0.0
  %502 = vadd.xlane.f32.xlu0 %v501
  %v503 = vpop.xlane.xlu0 %502
  %v504 = vmax.f32 %v494, 1e-24
  %v505 = vmax.f32 %v497, 1e-24
  %v506 = vmax.f32 %v500, 1e-24
  %v507 = vmax.f32 %v503, 1e-24
  %v508 = vrsqrt.pop %v504
  %v509 = vmul.f32 %v508, %v504
  %v510 = vmul.f32 %v509, %v508
  %v511 = vmul.f32 0.5, %v510
  %v512 = vsub.f32 1.5, %v511
  %v513 = vmul.f32 %v508, %v512
  %vm514 = vweird.f32 %v504
  %vm515 = vweird.f32 %v508
  %vm516 = vmor %vm514, %vm515
  %v517 = vsel %vm516, %v508, %v513
  %v518 = vrsqrt.pop %v505
  %v519 = vmul.f32 %v518, %v505
  %v520 = vmul.f32 %v519, %v518
  %v521 = vmul.f32 0.5, %v520
  %v522 = vsub.f32 1.5, %v521
  %v523 = vmul.f32 %v518, %v522
  %vm524 = vweird.f32 %v505
  %vm525 = vweird.f32 %v518
  %vm526 = vmor %vm524, %vm525
  %v527 = vsel %vm526, %v518, %v523
  %v528 = vrsqrt.pop %v506
  %v529 = vmul.f32 %v528, %v506
  %v530 = vmul.f32 %v529, %v528
  %v531 = vmul.f32 0.5, %v530
  %v532 = vsub.f32 1.5, %v531
  %v533 = vmul.f32 %v528, %v532
  %vm534 = vweird.f32 %v506
  %vm535 = vweird.f32 %v528
  %vm536 = vmor %vm534, %vm535
  %v537 = vsel %vm536, %v528, %v533
  %v538 = vrsqrt.pop %v507
  %v539 = vmul.f32 %v538, %v507
  %v540 = vmul.f32 %v539, %v538
  %v541 = vmul.f32 0.5, %v540
  %v542 = vsub.f32 1.5, %v541
  %v543 = vmul.f32 %v538, %v542
  %vm544 = vweird.f32 %v507
  %vm545 = vweird.f32 %v538
  %vm546 = vmor %vm544, %vm545
  %v547 = vsel %vm546, %v538, %v543
  %v548 = vmul.f32 %v412, %v517
  %v549 = vmul.f32 %v415, %v527
  %v550 = vmul.f32 %v418, %v537
  %v551 = vmul.f32 %v421, %v547
  %v552 = vadd.f32 %v484, %v548
  %v553 = vadd.f32 %v485, %v549
  %v554 = vadd.f32 %v486, %v550
  %v555 = vadd.f32 %v487, %v551
  %556 = vst.msk [vmem:[%s7] sm:$0xff] %vm427, %v552
  %557 = vst.msk [vmem:[%s7 + $0x8] sm:$0xff] %vm427, %v553
  %558 = vst.msk [vmem:[%s7 + $0x10] sm:$0xff] %vm427, %v554
  %559 = vst.msk [vmem:[%s7 + $0x18] sm:$0xff] %vm427, %v555
  // Predicated region
  $region30: #{neighbor_structure_embedding.3} parent=0 // pred_check
    _
  $region31: #{neighbor_structure_embedding.3} parent=0 // pred_check_branch
    %561 = sbr.rel (0) target = $region33
  $region32: #{neighbor_structure_embedding.3} parent=0 // pred_region
    _
  $region33: #{neighbor_structure_embedding.3} parent=0 // pred_fallthru
    _
  // Predicated region
  $region34: #{neighbor_structure_embedding.3} parent=0 // pred_check
    _
  $region35: #{neighbor_structure_embedding.3} parent=0 // pred_check_branch
    %563 = sbr.rel (0) target = $region37
  $region36: #{neighbor_structure_embedding.3} parent=0 // pred_region
    _
  $region37: #{neighbor_structure_embedding.3} parent=0 // pred_fallthru
    _

// kernel: neighbor_structure_embedding.2
$region0: #{neighbor_structure_embedding.2}
  #allocation0 [shape = 'u32[]', space=smem, size = 0x4, offset = 0x4, fixed_abs, tag = 'smem constant byte address 0x4 - core index']
  #allocation1 [shape = 'u32[72,128]{1,0:T(1,128)}', space=vmem, size = 0x9000, scoped, tag = 'internal scratch']
  %s0 = inlined_call_operand.vmem [shape: f32[1,32,3], index: 0, kind: input, shape index: {}]
  %s1 = inlined_call_operand.vmem [shape: f32[1,3,32], index: 1, kind: input, shape index: {}]
  %s2 = inlined_call_operand.vmem [shape: f32[1,32,6], index: 2, kind: output, shape index: {}]
  %s3 = sld [smem:[#allocation0]]
  $region41: #{neighbor_structure_embedding.2} parent=0
    _
  %s5 = ssub.s32 1, %s3
  %s6 = scalar_select 0, %s5, %s3
  loop: start=0, step=1, limit=4
  $region2: #{neighbor_structure_embedding.2} parent=0 // loop_pre_header
    _
  $region3: #{neighbor_structure_embedding.2} parent=0 // loop_header
    %s8 = sphi 0, %s12
    %p9 = scmp.ge.s32.totalorder %s8, 4
    %s15 = sphi 0, %s27
    %s16 = sphi 0, %s23
    %s17 = sphi 0, %s15
    %s18 = sphi 0, %s16
    %s19 = sphi 0, %s17
    %s20 = sphi 0, %s18
    %s32 = sphi 0, %s34
    %s35 = sphi 0, %s32
    %s36 = sphi 0, %s35
    %s52 = sphi 0, %s36
    %s58 = sphi 0, %s60
    %s61 = sphi 0, %s58
    %s62 = sphi 0, %s61
    %s78 = sphi 0, %s62
    %s86 = sphi 0, %s88
    %s89 = sphi 0, %s86
    %s90 = sphi 0, %s89
    %s106 = sphi 0, %s90
  $region4: #{neighbor_structure_embedding.2} parent=0 // loop_header_branch
    %11 = sbr.rel (%p9) target = $region8
  $region5: #{neighbor_structure_embedding.2} parent=0 // loop_body
    %s13 = ssub.s32 %s8, 1
    %s14 = ssub.s32 %s8, 2
    %s21 = sadd.s32 1, %s16
    %p22 = scmp.ge.s32.totalorder %s21, 2
    %s23 = scalar_select %p22, 0, %s21
    %s24 = sadd.s32 1, %s15
    %s25 = scalar_select %p22, %s24, %s15
    %p26 = scmp.ge.s32.totalorder %s25, 1
    %s27 = scalar_select %p26, 0, %s25
    %s28 = ssub.s32 %s15, %s27
    %s29 = ssub.s32 %s16, %s23
    %s30 = sor.u32 %s28, %s29
    %p31 = scmp.eq.s32.totalorder %s30, 0
    %s33 = sadd.s32 %s32, 1
    %s34 = scalar_select %p31, %s32, %s33
    %p37 = pneg %p31
    %p38 = scmp.eq.s32.totalorder %s8, 1
    %p39 = por %p37, %p38
    %p40 = scmp.ne.s32.totalorder %s32, %s35
    %p41 = scmp.eq.s32.totalorder %s8, 0
    %p42 = por %p40, %p41
    %p43 = scmp.ne.s32.totalorder %s32, %s35
    %p44 = scmp.eq.s32.totalorder %s13, 1
    %p45 = por %p43, %p44
    %p46 = scmp.ne.s32.totalorder %s35, %s36
    %p47 = scmp.eq.s32.totalorder %s13, 0
    %p48 = por %p46, %p47
    %p49 = scmp.ne.s32.totalorder %s35, %s36
    %p50 = scmp.eq.s32.totalorder %s14, 1
    %p51 = por %p49, %p50
    %p53 = scmp.ne.s32.totalorder %s36, %s52
    %p54 = scmp.eq.s32.totalorder %s14, 0
    %p55 = por %p53, %p54
    %s56 = ssub.s32 %s15, %s27
    %p57 = scmp.eq.s32.totalorder %s56, 0
    %s59 = sadd.s32 %s58, 1
    %s60 = scalar_select %p57, %s58, %s59
    %p63 = pneg %p57
    %p64 = scmp.eq.s32.totalorder %s8, 1
    %p65 = por %p63, %p64
    %p66 = scmp.ne.s32.totalorder %s58, %s61
    %p67 = scmp.eq.s32.totalorder %s8, 0
    %p68 = por %p66, %p67
    %p69 = scmp.ne.s32.totalorder %s58, %s61
    %p70 = scmp.eq.s32.totalorder %s13, 1
    %p71 = por %p69, %p70
    %p72 = scmp.ne.s32.totalorder %s61, %s62
    %p73 = scmp.eq.s32.totalorder %s13, 0
    %p74 = por %p72, %p73
    %p75 = scmp.ne.s32.totalorder %s61, %s62
    %p76 = scmp.eq.s32.totalorder %s14, 1
    %p77 = por %p75, %p76
    %p79 = scmp.ne.s32.totalorder %s62, %s78
    %p80 = scmp.eq.s32.totalorder %s14, 0
    %p81 = por %p79, %p80
    %s82 = ssub.s32 %s15, %s27
    %s83 = ssub.s32 %s16, %s23
    %s84 = sor.u32 %s82, %s83
    %p85 = scmp.eq.s32.totalorder %s84, 0
    %s87 = sadd.s32 %s86, 1
    %s88 = scalar_select %p85, %s86, %s87
    %p91 = pneg %p85
    %p92 = scmp.eq.s32.totalorder %s8, 1
    %p93 = por %p91, %p92
    %p94 = scmp.ne.s32.totalorder %s86, %s89
    %p95 = scmp.eq.s32.totalorder %s8, 0
    %p96 = por %p94, %p95
    %p97 = scmp.ne.s32.totalorder %s86, %s89
    %p98 = scmp.eq.s32.totalorder %s13, 1
    %p99 = por %p97, %p98
    %p100 = scmp.ne.s32.totalorder %s89, %s90
    %p101 = scmp.eq.s32.totalorder %s13, 0
    %p102 = por %p100, %p101
    %p103 = scmp.ne.s32.totalorder %s89, %s90
    %p104 = scmp.eq.s32.totalorder %s14, 1
    %p105 = por %p103, %p104
    %p107 = scmp.ne.s32.totalorder %s90, %s106
    %p108 = scmp.eq.s32.totalorder %s14, 0
    %p109 = por %p107, %p108
    %p110 = scmp.le.s32.totalorder 1, %s8
    %p111 = scmp.lt.s32.totalorder %s8, 3
    %p112 = pnand %p110, %p111
    %p113 = pneg %p112
    // Predicated region
    $region9: #{neighbor_structure_embedding.2} parent=5 // pred_check
      _
    $region10: #{neighbor_structure_embedding.2} parent=5 // pred_check_branch
      %115 = sbr.rel (%p112) target = $region12
    $region11: #{neighbor_structure_embedding.2} parent=5 // pred_region
      %s116 = ssub.s32 %s8, 1
      // Predicated region
      $region13: #{neighbor_structure_embedding.2} parent=11 // pred_check
        %p117 = pneg %p74
      $region14: #{neighbor_structure_embedding.2} parent=11 // pred_check_branch
        %119 = sbr.rel (%p117) target = $region16
      $region15: #{neighbor_structure_embedding.2} parent=11 // pred_region
        %p120 = scmp.lt.s32.totalorder %s17, 0
        %s121 = scalar_select %p120, %s17, 0
        %s122 = smul.addr %s121, 4
        %s123 = scalar_lea.vmem %s1, %s122
      $region16: #{neighbor_structure_embedding.2} parent=11 // pred_fallthru
        _
    $region12: #{neighbor_structure_embedding.2} parent=5 // pred_fallthru
      _
    %p124 = scmp.lt.s32.totalorder %s8, 2
    // Predicated region
    $region17: #{neighbor_structure_embedding.2} parent=5 // pred_check
      %p125 = pneg %p124
    $region18: #{neighbor_structure_embedding.2} parent=5 // pred_check_branch
      %127 = sbr.rel (%p125) target = $region20
    $region19: #{neighbor_structure_embedding.2} parent=5 // pred_region
      // Predicated region
      $region21: #{neighbor_structure_embedding.2} parent=19 // pred_check
        %p128 = pneg %p42
      $region22: #{neighbor_structure_embedding.2} parent=19 // pred_check_branch
        %130 = sbr.rel (%p128) target = $region24
      $region23: #{neighbor_structure_embedding.2} parent=19 // pred_region
        %s131 = smul.u32 2, %s16
        %p132 = scmp.lt.s32.totalorder %s15, 0
        %s133 = scalar_select %p132, %s15, 0
        %p134 = scmp.lt.s32.totalorder %s131, 3
        %s135 = scalar_select %p134, %s131, 3
        %s136 = smul.addr %s133, 4
        %s137 = sadd.s32 %s135, %s136
        %s138 = smul.addr %s137, 8
        %s139 = scalar_lea.vmem %s0, %s138
        %s140 = smul.u32 2, %s16
      $region24: #{neighbor_structure_embedding.2} parent=19 // pred_fallthru
        _
    $region20: #{neighbor_structure_embedding.2} parent=5 // pred_fallthru
      _
    %p141 = scmp.le.s32.totalorder 1, %s8
    %p142 = scmp.lt.s32.totalorder %s8, 3
    %p143 = pnand %p141, %p142
    %p144 = pneg %p143
    // Predicated region
    $region25: #{neighbor_structure_embedding.2} parent=5 // pred_check
      _
    $region26: #{neighbor_structure_embedding.2} parent=5 // pred_check_branch
      %146 = sbr.rel (%p143) target = $region28
    $region27: #{neighbor_structure_embedding.2} parent=5 // pred_region
      %s147 = ssub.s32 %s8, 1
      %s148 = smul.u32 2, %s18
      %p149 = scmp.lt.s32.totalorder %s17, 0
      %s150 = scalar_select %p149, %s17, 0
      %p151 = scmp.lt.s32.totalorder %s148, 3
      %s152 = scalar_select %p151, %s148, 3
      %s153 = smul.addr %s150, 4
      %s154 = sadd.s32 %s152, %s153
      %s155 = smul.addr %s154, 8
      %s156 = scalar_lea.vmem %s0, %s155
      %p157 = pneg %p48
      %p158 = pneg %p45
      %p159 = scmp.lt.s32.totalorder %s17, 0
      %s160 = scalar_select %p159, %s17, 0
      %s161 = smul.addr %s160, 4
      %s162 = scalar_lea.vmem %s1, %s161
      %p163 = pneg %p74
      %p164 = pneg %p71
      %p165 = pneg %p102
      %p166 = pneg %p99
      %s167 = smul.u32 2, %s18
      %p168 = scmp.lt.s32.totalorder %s17, 0
      %s169 = scalar_select %p168, %s17, 0
      %p170 = scmp.lt.s32.totalorder %s167, 3
      %s171 = scalar_select %p170, %s167, 3
      %s172 = smul.addr %s169, 4
      %s173 = sadd.s32 %s171, %s172
      %s174 = smul.addr %s173, 8
      %s175 = scalar_lea.vmem %s2, %s174
      %s176 = smul.u32 2, %s18
      %p177 = scmp.lt.s32.totalorder %s17, 0
      %s178 = scalar_select %p177, %s17, 0
      %p179 = scmp.lt.s32.totalorder %s176, 3
      %s180 = scalar_select %p179, %s176, 3
      %s181 = smul.addr %s178, 4
      %s182 = sadd.s32 %s180, %s181
      %s183 = smul.addr %s182, 8
      %s184 = scalar_lea.vmem %s0, %s183
      %s185 = smul.u32 2, %s18
      %p186 = scmp.lt.s32.totalorder %s17, 0
      %s187 = scalar_select %p186, %s17, 0
      %s188 = smul.addr %s187, 4
      %s189 = scalar_lea.vmem %s1, %s188
      %s190 = smul.u32 2, %s18
      %p191 = scmp.lt.s32.totalorder %s17, 0
      %s192 = scalar_select %p191, %s17, 0
      %p193 = scmp.lt.s32.totalorder %s190, 3
      %s194 = scalar_select %p193, %s190, 3
      %s195 = smul.addr %s192, 4
      %s196 = sadd.s32 %s194, %s195
      %s197 = smul.addr %s196, 8
      %s198 = scalar_lea.vmem %s2, %s197
      %s199 = smul.u32 2, %s18
      %v200 = vld [vmem:[%s184] sm:$0xff]
      %v201 = vld [vmem:[%s184 + $0x8] sm:$0xff]
      %v202 = vld [vmem:[%s189] sm:$0x1]
      %204 = vset.pattern.permute.xlu0 0
      %205 = vperm.xlu0 %204, %v200
      %v206 = vpop.permute.xlu0 %205
      %209 = vset.pattern.permute.xlu0 0
      %210 = vperm.xlu0 %209, %v201
      %v211 = vpop.permute.xlu0 %210
      %v213 = vperm.slane %v202, 0
      %v214 = vsub.f32 %v206, %v213
      %v215 = vsub.f32 %v211, %v213
      %v216 = vld [vmem:[%s189 + $0x1] sm:$0x1]
      %217 = vset.pattern.permute.xlu0 1
      %218 = vperm.xlu0 %217, %v200
      %v219 = vpop.permute.xlu0 %218
      %221 = vset.pattern.permute.xlu0 1
      %222 = vperm.xlu0 %221, %v201
      %v223 = vpop.permute.xlu0 %222
      %v225 = vperm.slane %v216, 0
      %v226 = vsub.f32 %v219, %v225
      %v227 = vsub.f32 %v223, %v225
      %v228 = vld [vmem:[%s189 + $0x2] sm:$0x1]
      %229 = vset.pattern.permute.xlu0 2
      %230 = vperm.xlu0 %229, %v200
      %v231 = vpop.permute.xlu0 %230
      %233 = vset.pattern.permute.xlu0 2
      %234 = vperm.xlu0 %233, %v201
      %v235 = vpop.permute.xlu0 %234
      %v237 = vperm.slane %v228, 0
      %v238 = vsub.f32 %v231, %v237
      %v239 = vsub.f32 %v235, %v237
      %v240 = vmul.f32 %v214, %v214
      %v241 = vmul.f32 %v215, %v215
      %v242 = vmul.f32 %v226, %v226
      %v243 = vmul.f32 %v227, %v227
      %v244 = vadd.f32 %v240, %v242
      %v245 = vadd.f32 %v241, %v243
      %v246 = vmul.f32 %v238, %v238
      %v247 = vmul.f32 %v239, %v239
      %v248 = vadd.f32 %v244, %v246
      %v249 = vadd.f32 %v245, %v247
      %vm250 = vcmp.lt.f32.partialorder %v248, 0.25
      %vm251 = vcmp.lt.f32.partialorder %v249, 0.25
      %v252 = vsel %vm250, 1, 0
      %v253 = vsel %vm251, 1, 0
      %v254 = vcvt.s32.f32 %v252
      %v255 = vcvt.s32.f32 %v253
      %vm256 = vcmask 261120
      %v257 = vsel %vm256, %v254, 0.0
      %258 = vadd.xlane.f32.xlu0 %v257
      %v259 = vpop.xlane.xlu0 %258
      %v260 = vsel %vm256, %v255, 0.0
      %261 = vadd.xlane.f32.xlu0 %v260
      %v262 = vpop.xlane.xlu0 %261
      %v263 = vmul.f32 %v259, 1.9098593
      %v264 = vmul.f32 %v262, 1.9098593
      %vm265 = vcmask 7168
      %266 = vst.msk [vmem:[%s198] sm:$0xff] %vm265, %v263
      %267 = vst.msk [vmem:[%s198 + $0x8] sm:$0xff] %vm265, %v264
      %vm268 = vcmp.lt.f32.partialorder %v248, 1.0
      %vm269 = vcmp.lt.f32.partialorder %v249, 1.0
      %v270 = vsel %vm268, 1, 0
      %v271 = vsel %vm269, 1, 0
      %v272 = vcvt.s32.f32 %v270
      %v273 = vcvt.s32.f32 %v271
      %v274 = vsel %vm256, %v272, 0.0
      %275 = vadd.xlane.f32.xlu0 %v274
      %v276 = vpop.xlane.xlu0 %275
      %v277 = vsel %vm256, %v273, 0.0
      %278 = vadd.xlane.f32.xlu0 %v277
      %v279 = vpop.xlane.xlu0 %278
      %v280 = vmul.f32 %v276, 0.23873241
      %v281 = vmul.f32 %v279, 0.23873241
      %vm282 = vcmask 15368
      %283 = vst.msk [vmem:[%s198] sm:$0xff] %vm282, %v280
      %284 = vst.msk [vmem:[%s198 + $0x8] sm:$0xff] %vm282, %v281
      %vm285 = vcmp.lt.f32.partialorder %v248, 2.25
      %vm286 = vcmp.lt.f32.partialorder %v249, 2.25
      %v287 = vsel %vm285, 1, 0
      %v288 = vsel %vm286, 1, 0
      %v289 = vcvt.s32.f32 %v287
      %v290 = vcvt.s32.f32 %v288
      %v291 = vsel %vm256, %v289, 0.0
      %292 = vadd.xlane.f32.xlu0 %v291
      %v293 = vpop.xlane.xlu0 %292
      %v294 = vsel %vm256, %v290, 0.0
      %295 = vadd.xlane.f32.xlu0 %v294
      %v296 = vpop.xlane.xlu0 %295
      %v297 = vmul.f32 %v293, 0.07073553
      %v298 = vmul.f32 %v296, 0.07073553
      %vm299 = vcmask 23568
      %300 = vst.msk [vmem:[%s198] sm:$0xff] %vm299, %v297
      %301 = vst.msk [vmem:[%s198 + $0x8] sm:$0xff] %vm299, %v298
      %vm302 = vcmp.gt.f32.partialorder %v248, 0.0
      %vm303 = vcmp.gt.f32.partialorder %v249, 0.0
      %v304 = vsel %vm302, %v248, 1e+30
      %v305 = vsel %vm303, %v249, 1e+30
      %v306 = vsel %vm256, %v304, inf
      %307 = vmin.xlane.f32.xlu0 %v306
      %v308 = vpop.xlane.xlu0 %307
      %v309 = vsel %vm256, %v305, inf
      %310 = vmin.xlane.f32.xlu0 %v309
      %v311 = vpop.xlane.xlu0 %310
      %v312 = vrsqrt.pop %v308
      %v313 = vmul.f32 %v312, %v308
      %v314 = vmul.f32 %v313, %v312
      %v315 = vmul.f32 0.5, %v314
      %v316 = vsub.f32 1.5, %v315
      %v317 = vmul.f32 %v312, %v316
      %v318 = vmul.f32 %v308, %v317
      %vm319 = vcmp.eq.f32.partialorder %v308, inf
      %v320 = vsel %vm319, %v308, %v318
      %vm321 = vcmp.eq.f32.partialorder %v308, 0.0
      %v322 = vand.u32 %v308, 2147483648
      %v323 = vsel %vm321, %v322, %v320
      %v324 = vrsqrt.pop %v311
      %v325 = vmul.f32 %v324, %v311
      %v326 = vmul.f32 %v325, %v324
      %v327 = vmul.f32 0.5, %v326
      %v328 = vsub.f32 1.5, %v327
      %v329 = vmul.f32 %v324, %v328
      %v330 = vmul.f32 %v311, %v329
      %vm331 = vcmp.eq.f32.partialorder %v311, inf
      %v332 = vsel %vm331, %v311, %v330
      %vm333 = vcmp.eq.f32.partialorder %v311, 0.0
      %v334 = vand.u32 %v311, 2147483648
      %v335 = vsel %vm333, %v334, %v332
      %v336 = vadd.f32 %v323, 0.0
      %v337 = vadd.f32 %v335, 0.0
      %v338 = vlog2.pop %v308
      %v339 = vmul.f32 %v338, 0.6931472
      %v340 = vlog2.pop %v311
      %v341 = vmul.f32 %v340, 0.6931472
      %v342 = vmul.f32 %v339, 0.5
      %v343 = vmul.f32 %v341, 0.5
      %v344 = vmul.f32 %v323, %v342
      %v345 = vmul.f32 %v335, %v343
      %v346 = vadd.f32 %v344, 0.0
      %v347 = vadd.f32 %v345, 0.0
      %vm348 = vcmp.gt.f32.partialorder %v248, %v308
      %vm349 = vcmp.gt.f32.partialorder %v249, %v311
      %v350 = vsel %vm348, %v248, 1e+30
      %v351 = vsel %vm349, %v249, 1e+30
      %v352 = vsel %vm256, %v350, inf
      %353 = vmin.xlane.f32.xlu0 %v352
      %v354 = vpop.xlane.xlu0 %353
      %v355 = vsel %vm256, %v351, inf
      %356 = vmin.xlane.f32.xlu0 %v355
      %v357 = vpop.xlane.xlu0 %356
      %v358 = vrsqrt.pop %v354
      %v359 = vmul.f32 %v358, %v354
      %v360 = vmul.f32 %v359, %v358
      %v361 = vmul.f32 0.5, %v360
      %v362 = vsub.f32 1.5, %v361
      %v363 = vmul.f32 %v358, %v362
      %v364 = vmul.f32 %v354, %v363
      %vm365 = vcmp.eq.f32.partialorder %v354, inf
      %v366 = vsel %vm365, %v354, %v364
      %vm367 = vcmp.eq.f32.partialorder %v354, 0.0
      %v368 = vand.u32 %v354, 2147483648
      %v369 = vsel %vm367, %v368, %v366
      %v370 = vrsqrt.pop %v357
      %v371 = vmul.f32 %v370, %v357
      %v372 = vmul.f32 %v371, %v370
      %v373 = vmul.f32 0.5, %v372
      %v374 = vsub.f32 1.5, %v373
      %v375 = vmul.f32 %v370, %v374
      %v376 = vmul.f32 %v357, %v375
      %vm377 = vcmp.eq.f32.partialorder %v357, inf
      %v378 = vsel %vm377, %v357, %v376
      %vm379 = vcmp.eq.f32.partialorder %v357, 0.0
      %v380 = vand.u32 %v357, 2147483648
      %v381 = vsel %vm379, %v380, %v378
      %v382 = vadd.f32 %v336, %v369
      %v383 = vadd.f32 %v337, %v381
      %v384 = vlog2.pop %v354
      %v385 = vmul.f32 %v384, 0.6931472
      %v386 = vlog2.pop %v357
      %v387 = vmul.f32 %v386, 0.6931472
      %v388 = vmul.f32 %v385, 0.5
      %v389 = vmul.f32 %v387, 0.5
      %v390 = vmul.f32 %v369, %v388
      %v391 = vmul.f32 %v381, %v389
      %v392 = vadd.f32 %v346, %v390
      %v393 = vadd.f32 %v347, %v391
      %vm394 = vcmp.gt.f32.partialorder %v248, %v354
      %vm395 = vcmp.gt.f32.partialorder %v249, %v357
      %v396 = vsel %vm394, %v248, 1e+30
      %v397 = vsel %vm395, %v249, 1e+30
      %v398 = vsel %vm256, %v396, inf
      %399 = vmin.xlane.f32.xlu0 %v398
      %v400 = vpop.xlane.xlu0 %399
      %v401 = vsel %vm256, %v397, inf
      %402 = vmin.xlane.f32.xlu0 %v401
      %v403 = vpop.xlane.xlu0 %402
      %v404 = vrsqrt.pop %v400
      %v405 = vmul.f32 %v404, %v400
      %v406 = vmul.f32 %v405, %v404
      %v407 = vmul.f32 0.5, %v406
      %v408 = vsub.f32 1.5, %v407
      %v409 = vmul.f32 %v404, %v408
      %v410 = vmul.f32 %v400, %v409
      %vm411 = vcmp.eq.f32.partialorder %v400, inf
      %v412 = vsel %vm411, %v400, %v410
      %vm413 = vcmp.eq.f32.partialorder %v400, 0.0
      %v414 = vand.u32 %v400, 2147483648
      %v415 = vsel %vm413, %v414, %v412
      %v416 = vrsqrt.pop %v403
      %v417 = vmul.f32 %v416, %v403
      %v418 = vmul.f32 %v417, %v416
      %v419 = vmul.f32 0.5, %v418
      %v420 = vsub.f32 1.5, %v419
      %v421 = vmul.f32 %v416, %v420
      %v422 = vmul.f32 %v403, %v421
      %vm423 = vcmp.eq.f32.partialorder %v403, inf
      %v424 = vsel %vm423, %v403, %v422
      %vm425 = vcmp.eq.f32.partialorder %v403, 0.0
      %v426 = vand.u32 %v403, 2147483648
      %v427 = vsel %vm425, %v426, %v424
      %v428 = vadd.f32 %v382, %v415
      %v429 = vadd.f32 %v383, %v427
      %v430 = vlog2.pop %v400
      %v431 = vmul.f32 %v430, 0.6931472
      %v432 = vlog2.pop %v403
      %v433 = vmul.f32 %v432, 0.6931472
      %v434 = vmul.f32 %v431, 0.5
      %v435 = vmul.f32 %v433, 0.5
      %v436 = vmul.f32 %v415, %v434
      %v437 = vmul.f32 %v427, %v435
      %v438 = vadd.f32 %v392, %v436
      %v439 = vadd.f32 %v393, %v437
      %vm440 = vcmp.gt.f32.partialorder %v248, %v400
      %vm441 = vcmp.gt.f32.partialorder %v249, %v403
      %v442 = vsel %vm440, %v248, 1e+30
      %v443 = vsel %vm441, %v249, 1e+30
      %v444 = vsel %vm256, %v442, inf
      %445 = vmin.xlane.f32.xlu0 %v444
      %v446 = vpop.xlane.xlu0 %445
      %v447 = vsel %vm256, %v443, inf
      %448 = vmin.xlane.f32.xlu0 %v447
      %v449 = vpop.xlane.xlu0 %448
      %v450 = vrsqrt.pop %v446
      %v451 = vmul.f32 %v450, %v446
      %v452 = vmul.f32 %v451, %v450
      %v453 = vmul.f32 0.5, %v452
      %v454 = vsub.f32 1.5, %v453
      %v455 = vmul.f32 %v450, %v454
      %v456 = vmul.f32 %v446, %v455
      %vm457 = vcmp.eq.f32.partialorder %v446, inf
      %v458 = vsel %vm457, %v446, %v456
      %vm459 = vcmp.eq.f32.partialorder %v446, 0.0
      %v460 = vand.u32 %v446, 2147483648
      %v461 = vsel %vm459, %v460, %v458
      %v462 = vrsqrt.pop %v449
      %v463 = vmul.f32 %v462, %v449
      %v464 = vmul.f32 %v463, %v462
      %v465 = vmul.f32 0.5, %v464
      %v466 = vsub.f32 1.5, %v465
      %v467 = vmul.f32 %v462, %v466
      %v468 = vmul.f32 %v449, %v467
      %vm469 = vcmp.eq.f32.partialorder %v449, inf
      %v470 = vsel %vm469, %v449, %v468
      %vm471 = vcmp.eq.f32.partialorder %v449, 0.0
      %v472 = vand.u32 %v449, 2147483648
      %v473 = vsel %vm471, %v472, %v470
      %v474 = vadd.f32 %v428, %v461
      %v475 = vadd.f32 %v429, %v473
      %v476 = vlog2.pop %v446
      %v477 = vmul.f32 %v476, 0.6931472
      %v478 = vlog2.pop %v449
      %v479 = vmul.f32 %v478, 0.6931472
      %v480 = vmul.f32 %v477, 0.5
      %v481 = vmul.f32 %v479, 0.5
      %v482 = vmul.f32 %v461, %v480
      %v483 = vmul.f32 %v473, %v481
      %v484 = vadd.f32 %v438, %v482
      %v485 = vadd.f32 %v439, %v483
      %vm486 = vcmp.gt.f32.partialorder %v248, %v446
      %vm487 = vcmp.gt.f32.partialorder %v249, %v449
      %v488 = vsel %vm486, %v248, 1e+30
      %v489 = vsel %vm487, %v249, 1e+30
      %v490 = vsel %vm256, %v488, inf
      %491 = vmin.xlane.f32.xlu0 %v490
      %v492 = vpop.xlane.xlu0 %491
      %v493 = vsel %vm256, %v489, inf
      %494 = vmin.xlane.f32.xlu0 %v493
      %v495 = vpop.xlane.xlu0 %494
      %v496 = vrsqrt.pop %v492
      %v497 = vmul.f32 %v496, %v492
      %v498 = vmul.f32 %v497, %v496
      %v499 = vmul.f32 0.5, %v498
      %v500 = vsub.f32 1.5, %v499
      %v501 = vmul.f32 %v496, %v500
      %v502 = vmul.f32 %v492, %v501
      %vm503 = vcmp.eq.f32.partialorder %v492, inf
      %v504 = vsel %vm503, %v492, %v502
      %vm505 = vcmp.eq.f32.partialorder %v492, 0.0
      %v506 = vand.u32 %v492, 2147483648
      %v507 = vsel %vm505, %v506, %v504
      %v508 = vrsqrt.pop %v495
      %v509 = vmul.f32 %v508, %v495
      %v510 = vmul.f32 %v509, %v508
      %v511 = vmul.f32 0.5, %v510
      %v512 = vsub.f32 1.5, %v511
      %v513 = vmul.f32 %v508, %v512
      %v514 = vmul.f32 %v495, %v513
      %vm515 = vcmp.eq.f32.partialorder %v495, inf
      %v516 = vsel %vm515, %v495, %v514
      %vm517 = vcmp.eq.f32.partialorder %v495, 0.0
      %v518 = vand.u32 %v495, 2147483648
      %v519 = vsel %vm517, %v518, %v516
      %v520 = vadd.f32 %v474, %v507
      %v521 = vadd.f32 %v475, %v519
      %v522 = vlog2.pop %v492
      %v523 = vmul.f32 %v522, 0.6931472
      %v524 = vlog2.pop %v495
      %v525 = vmul.f32 %v524, 0.6931472
      %v526 = vmul.f32 %v523, 0.5
      %v527 = vmul.f32 %v525, 0.5
      %v528 = vmul.f32 %v507, %v526
      %v529 = vmul.f32 %v519, %v527
      %v530 = vadd.f32 %v484, %v528
      %v531 = vadd.f32 %v485, %v529
      %vm532 = vcmp.gt.f32.partialorder %v248, %v492
      %vm533 = vcmp.gt.f32.partialorder %v249, %v495
      %v534 = vsel %vm532, %v248, 1e+30
      %v535 = vsel %vm533, %v249, 1e+30
      %v536 = vsel %vm256, %v534, inf
      %537 = vmin.xlane.f32.xlu0 %v536
      %v538 = vpop.xlane.xlu0 %537
      %v539 = vsel %vm256, %v535, inf
      %540 = vmin.xlane.f32.xlu0 %v539
      %v541 = vpop.xlane.xlu0 %540
      %v542 = vrsqrt.pop %v538
      %v543 = vmul.f32 %v542, %v538
      %v544 = vmul.f32 %v543, %v542
      %v545 = vmul.f32 0.5, %v544
      %v546 = vsub.f32 1.5, %v545
      %v547 = vmul.f32 %v542, %v546
      %v548 = vmul.f32 %v538, %v547
      %vm549 = vcmp.eq.f32.partialorder %v538, inf
      %v550 = vsel %vm549, %v538, %v548
      %vm551 = vcmp.eq.f32.partialorder %v538, 0.0
      %v552 = vand.u32 %v538, 2147483648
      %v553 = vsel %vm551, %v552, %v550
      %v554 = vrsqrt.pop %v541
      %v555 = vmul.f32 %v554, %v541
      %v556 = vmul.f32 %v555, %v554
      %v557 = vmul.f32 0.5, %v556
      %v558 = vsub.f32 1.5, %v557
      %v559 = vmul.f32 %v554, %v558
      %v560 = vmul.f32 %v541, %v559
      %vm561 = vcmp.eq.f32.partialorder %v541, inf
      %v562 = vsel %vm561, %v541, %v560
      %vm563 = vcmp.eq.f32.partialorder %v541, 0.0
      %v564 = vand.u32 %v541, 2147483648
      %v565 = vsel %vm563, %v564, %v562
      %v566 = vadd.f32 %v520, %v553
      %v567 = vadd.f32 %v521, %v565
      %v568 = vlog2.pop %v538
      %v569 = vmul.f32 %v568, 0.6931472
      %v570 = vlog2.pop %v541
      %v571 = vmul.f32 %v570, 0.6931472
      %v572 = vmul.f32 %v569, 0.5
      %v573 = vmul.f32 %v571, 0.5
      %v574 = vmul.f32 %v553, %v572
      %v575 = vmul.f32 %v565, %v573
      %v576 = vadd.f32 %v530, %v574
      %v577 = vadd.f32 %v531, %v575
      %vm578 = vcmp.gt.f32.partialorder %v248, %v538
      %vm579 = vcmp.gt.f32.partialorder %v249, %v541
      %v580 = vsel %vm578, %v248, 1e+30
      %v581 = vsel %vm579, %v249, 1e+30
      %v582 = vsel %vm256, %v580, inf
      %583 = vmin.xlane.f32.xlu0 %v582
      %v584 = vpop.xlane.xlu0 %583
      %v585 = vsel %vm256, %v581, inf
      %586 = vmin.xlane.f32.xlu0 %v585
      %v587 = vpop.xlane.xlu0 %586
      %v588 = vrsqrt.pop %v584
      %v589 = vmul.f32 %v588, %v584
      %v590 = vmul.f32 %v589, %v588
      %v591 = vmul.f32 0.5, %v590
      %v592 = vsub.f32 1.5, %v591
      %v593 = vmul.f32 %v588, %v592
      %v594 = vmul.f32 %v584, %v593
      %vm595 = vcmp.eq.f32.partialorder %v584, inf
      %v596 = vsel %vm595, %v584, %v594
      %vm597 = vcmp.eq.f32.partialorder %v584, 0.0
      %v598 = vand.u32 %v584, 2147483648
      %v599 = vsel %vm597, %v598, %v596
      %v600 = vrsqrt.pop %v587
      %v601 = vmul.f32 %v600, %v587
      %v602 = vmul.f32 %v601, %v600
      %v603 = vmul.f32 0.5, %v602
      %v604 = vsub.f32 1.5, %v603
      %v605 = vmul.f32 %v600, %v604
      %v606 = vmul.f32 %v587, %v605
      %vm607 = vcmp.eq.f32.partialorder %v587, inf
      %v608 = vsel %vm607, %v587, %v606
      %vm609 = vcmp.eq.f32.partialorder %v587, 0.0
      %v610 = vand.u32 %v587, 2147483648
      %v611 = vsel %vm609, %v610, %v608
      %v612 = vadd.f32 %v566, %v599
      %v613 = vadd.f32 %v567, %v611
      %v614 = vlog2.pop %v584
      %v615 = vmul.f32 %v614, 0.6931472
      %v616 = vlog2.pop %v587
      %v617 = vmul.f32 %v616, 0.6931472
      %v618 = vmul.f32 %v615, 0.5
      %v619 = vmul.f32 %v617, 0.5
      %v620 = vmul.f32 %v599, %v618
      %v621 = vmul.f32 %v611, %v619
      %v622 = vadd.f32 %v576, %v620
      %v623 = vadd.f32 %v577, %v621
      %vm624 = vcmp.gt.f32.partialorder %v248, %v584
      %vm625 = vcmp.gt.f32.partialorder %v249, %v587
      %v626 = vsel %vm624, %v248, 1e+30
      %v627 = vsel %vm625, %v249, 1e+30
      %v628 = vsel %vm256, %v626, inf
      %629 = vmin.xlane.f32.xlu0 %v628
      %v630 = vpop.xlane.xlu0 %629
      %v631 = vsel %vm256, %v627, inf
      %632 = vmin.xlane.f32.xlu0 %v631
      %v633 = vpop.xlane.xlu0 %632
      %v634 = vrsqrt.pop %v630
      %v635 = vmul.f32 %v634, %v630
      %v636 = vmul.f32 %v635, %v634
      %v637 = vmul.f32 0.5, %v636
      %v638 = vsub.f32 1.5, %v637
      %v639 = vmul.f32 %v634, %v638
      %v640 = vmul.f32 %v630, %v639
      %vm641 = vcmp.eq.f32.partialorder %v630, inf
      %v642 = vsel %vm641, %v630, %v640
      %vm643 = vcmp.eq.f32.partialorder %v630, 0.0
      %v644 = vand.u32 %v630, 2147483648
      %v645 = vsel %vm643, %v644, %v642
      %v646 = vrsqrt.pop %v633
      %v647 = vmul.f32 %v646, %v633
      %v648 = vmul.f32 %v647, %v646
      %v649 = vmul.f32 0.5, %v648
      %v650 = vsub.f32 1.5, %v649
      %v651 = vmul.f32 %v646, %v650
      %v652 = vmul.f32 %v633, %v651
      %vm653 = vcmp.eq.f32.partialorder %v633, inf
      %v654 = vsel %vm653, %v633, %v652
      %vm655 = vcmp.eq.f32.partialorder %v633, 0.0
      %v656 = vand.u32 %v633, 2147483648
      %v657 = vsel %vm655, %v656, %v654
      %v658 = vadd.f32 %v612, %v645
      %v659 = vadd.f32 %v613, %v657
      %v660 = vlog2.pop %v630
      %v661 = vmul.f32 %v660, 0.6931472
      %v662 = vlog2.pop %v633
      %v663 = vmul.f32 %v662, 0.6931472
      %v664 = vmul.f32 %v661, 0.5
      %v665 = vmul.f32 %v663, 0.5
      %v666 = vmul.f32 %v645, %v664
      %v667 = vmul.f32 %v657, %v665
      %v668 = vadd.f32 %v622, %v666
      %v669 = vadd.f32 %v623, %v667
      %vm670 = vcmp.gt.f32.partialorder %v248, %v630
      %vm671 = vcmp.gt.f32.partialorder %v249, %v633
      %v672 = vsel %vm670, %v248, 1e+30
      %v673 = vsel %vm671, %v249, 1e+30
      %v674 = vsel %vm256, %v672, inf
      %675 = vmin.xlane.f32.xlu0 %v674
      %v676 = vpop.xlane.xlu0 %675
      %v677 = vsel %vm256, %v673, inf
      %678 = vmin.xlane.f32.xlu0 %v677
      %v679 = vpop.xlane.xlu0 %678
      %v680 = vrsqrt.pop %v676
      %v681 = vmul.f32 %v680, %v676
      %v682 = vmul.f32 %v681, %v680
      %v683 = vmul.f32 0.5, %v682
      %v684 = vsub.f32 1.5, %v683
      %v685 = vmul.f32 %v680, %v684
      %v686 = vmul.f32 %v676, %v685
      %vm687 = vcmp.eq.f32.partialorder %v676, inf
      %v688 = vsel %vm687, %v676, %v686
      %vm689 = vcmp.eq.f32.partialorder %v676, 0.0
      %v690 = vand.u32 %v676, 2147483648
      %v691 = vsel %vm689, %v690, %v688
      %v692 = vrsqrt.pop %v679
      %v693 = vmul.f32 %v692, %v679
      %v694 = vmul.f32 %v693, %v692
      %v695 = vmul.f32 0.5, %v694
      %v696 = vsub.f32 1.5, %v695
      %v697 = vmul.f32 %v692, %v696
      %v698 = vmul.f32 %v679, %v697
      %vm699 = vcmp.eq.f32.partialorder %v679, inf
      %v700 = vsel %vm699, %v679, %v698
      %vm701 = vcmp.eq.f32.partialorder %v679, 0.0
      %v702 = vand.u32 %v679, 2147483648
      %v703 = vsel %vm701, %v702, %v700
      %v704 = vadd.f32 %v658, %v691
      %v705 = vadd.f32 %v659, %v703
      %v706 = vlog2.pop %v676
      %v707 = vmul.f32 %v706, 0.6931472
      %v708 = vlog2.pop %v679
      %v709 = vmul.f32 %v708, 0.6931472
      %v710 = vmul.f32 %v707, 0.5
      %v711 = vmul.f32 %v709, 0.5
      %v712 = vmul.f32 %v691, %v710
      %v713 = vmul.f32 %v703, %v711
      %v714 = vadd.f32 %v668, %v712
      %v715 = vadd.f32 %v669, %v713
      %vm716 = vcmp.gt.f32.partialorder %v248, %v676
      %vm717 = vcmp.gt.f32.partialorder %v249, %v679
      %v718 = vsel %vm716, %v248, 1e+30
      %v719 = vsel %vm717, %v249, 1e+30
      %v720 = vsel %vm256, %v718, inf
      %721 = vmin.xlane.f32.xlu0 %v720
      %v722 = vpop.xlane.xlu0 %721
      %v723 = vsel %vm256, %v719, inf
      %724 = vmin.xlane.f32.xlu0 %v723
      %v725 = vpop.xlane.xlu0 %724
      %v726 = vrsqrt.pop %v722
      %v727 = vmul.f32 %v726, %v722
      %v728 = vmul.f32 %v727, %v726
      %v729 = vmul.f32 0.5, %v728
      %v730 = vsub.f32 1.5, %v729
      %v731 = vmul.f32 %v726, %v730
      %v732 = vmul.f32 %v722, %v731
      %vm733 = vcmp.eq.f32.partialorder %v722, inf
      %v734 = vsel %vm733, %v722, %v732
      %vm735 = vcmp.eq.f32.partialorder %v722, 0.0
      %v736 = vand.u32 %v722, 2147483648
      %v737 = vsel %vm735, %v736, %v734
      %v738 = vrsqrt.pop %v725
      %v739 = vmul.f32 %v738, %v725
      %v740 = vmul.f32 %v739, %v738
      %v741 = vmul.f32 0.5, %v740
      %v742 = vsub.f32 1.5, %v741
      %v743 = vmul.f32 %v738, %v742
      %v744 = vmul.f32 %v725, %v743
      %vm745 = vcmp.eq.f32.partialorder %v725, inf
      %v746 = vsel %vm745, %v725, %v744
      %vm747 = vcmp.eq.f32.partialorder %v725, 0.0
      %v748 = vand.u32 %v725, 2147483648
      %v749 = vsel %vm747, %v748, %v746
      %v750 = vadd.f32 %v704, %v737
      %v751 = vadd.f32 %v705, %v749
      %v752 = vlog2.pop %v722
      %v753 = vmul.f32 %v752, 0.6931472
      %v754 = vlog2.pop %v725
      %v755 = vmul.f32 %v754, 0.6931472
      %v756 = vmul.f32 %v753, 0.5
      %v757 = vmul.f32 %v755, 0.5
      %v758 = vmul.f32 %v737, %v756
      %v759 = vmul.f32 %v749, %v757
      %v760 = vadd.f32 %v714, %v758
      %v761 = vadd.f32 %v715, %v759
      %vm762 = vcmp.gt.f32.partialorder %v248, %v722
      %vm763 = vcmp.gt.f32.partialorder %v249, %v725
      %v764 = vsel %vm762, %v248, 1e+30
      %v765 = vsel %vm763, %v249, 1e+30
      %v766 = vsel %vm256, %v764, inf
      %767 = vmin.xlane.f32.xlu0 %v766
      %v768 = vpop.xlane.xlu0 %767
      %v769 = vsel %vm256, %v765, inf
      %770 = vmin.xlane.f32.xlu0 %v769
      %v771 = vpop.xlane.xlu0 %770
      %v772 = vrsqrt.pop %v768
      %v773 = vmul.f32 %v772, %v768
      %v774 = vmul.f32 %v773, %v772
      %v775 = vmul.f32 0.5, %v774
      %v776 = vsub.f32 1.5, %v775
      %v777 = vmul.f32 %v772, %v776
      %v778 = vmul.f32 %v768, %v777
      %vm779 = vcmp.eq.f32.partialorder %v768, inf
      %v780 = vsel %vm779, %v768, %v778
      %vm781 = vcmp.eq.f32.partialorder %v768, 0.0
      %v782 = vand.u32 %v768, 2147483648
      %v783 = vsel %vm781, %v782, %v780
      %v784 = vrsqrt.pop %v771
      %v785 = vmul.f32 %v784, %v771
      %v786 = vmul.f32 %v785, %v784
      %v787 = vmul.f32 0.5, %v786
      %v788 = vsub.f32 1.5, %v787
      %v789 = vmul.f32 %v784, %v788
      %v790 = vmul.f32 %v771, %v789
      %vm791 = vcmp.eq.f32.partialorder %v771, inf
      %v792 = vsel %vm791, %v771, %v790
      %vm793 = vcmp.eq.f32.partialorder %v771, 0.0
      %v794 = vand.u32 %v771, 2147483648
      %v795 = vsel %vm793, %v794, %v792
      %v796 = vadd.f32 %v750, %v783
      %v797 = vadd.f32 %v751, %v795
      %v798 = vlog2.pop %v768
      %v799 = vmul.f32 %v798, 0.6931472
      %v800 = vlog2.pop %v771
      %v801 = vmul.f32 %v800, 0.6931472
      %v802 = vmul.f32 %v799, 0.5
      %v803 = vmul.f32 %v801, 0.5
      %v804 = vmul.f32 %v783, %v802
      %v805 = vmul.f32 %v795, %v803
      %v806 = vadd.f32 %v760, %v804
      %v807 = vadd.f32 %v761, %v805
      %vm808 = vcmp.gt.f32.partialorder %v248, %v768
      %vm809 = vcmp.gt.f32.partialorder %v249, %v771
      %v810 = vsel %vm808, %v248, 1e+30
      %v811 = vsel %vm809, %v249, 1e+30
      %v812 = vsel %vm256, %v810, inf
      %813 = vmin.xlane.f32.xlu0 %v812
      %v814 = vpop.xlane.xlu0 %813
      %v815 = vsel %vm256, %v811, inf
      %816 = vmin.xlane.f32.xlu0 %v815
      %v817 = vpop.xlane.xlu0 %816
      %v818 = vrsqrt.pop %v814
      %v819 = vmul.f32 %v818, %v814
      %v820 = vmul.f32 %v819, %v818
      %v821 = vmul.f32 0.5, %v820
      %v822 = vsub.f32 1.5, %v821
      %v823 = vmul.f32 %v818, %v822
      %v824 = vmul.f32 %v814, %v823
      %vm825 = vcmp.eq.f32.partialorder %v814, inf
      %v826 = vsel %vm825, %v814, %v824
      %vm827 = vcmp.eq.f32.partialorder %v814, 0.0
      %v828 = vand.u32 %v814, 2147483648
      %v829 = vsel %vm827, %v828, %v826
      %v830 = vrsqrt.pop %v817
      %v831 = vmul.f32 %v830, %v817
      %v832 = vmul.f32 %v831, %v830
      %v833 = vmul.f32 0.5, %v832
      %v834 = vsub.f32 1.5, %v833
      %v835 = vmul.f32 %v830, %v834
      %v836 = vmul.f32 %v817, %v835
      %vm837 = vcmp.eq.f32.partialorder %v817, inf
      %v838 = vsel %vm837, %v817, %v836
      %vm839 = vcmp.eq.f32.partialorder %v817, 0.0
      %v840 = vand.u32 %v817, 2147483648
      %v841 = vsel %vm839, %v840, %v838
      %v842 = vadd.f32 %v796, %v829
      %v843 = vadd.f32 %v797, %v841
      %v844 = vlog2.pop %v814
      %v845 = vmul.f32 %v844, 0.6931472
      %v846 = vlog2.pop %v817
      %v847 = vmul.f32 %v846, 0.6931472
      %v848 = vmul.f32 %v845, 0.5
      %v849 = vmul.f32 %v847, 0.5
      %v850 = vmul.f32 %v829, %v848
      %v851 = vmul.f32 %v841, %v849
      %v852 = vadd.f32 %v806, %v850
      %v853 = vadd.f32 %v807, %v851
      %vm854 = vcmp.gt.f32.partialorder %v248, %v814
      %vm855 = vcmp.gt.f32.partialorder %v249, %v817
      %v856 = vsel %vm854, %v248, 1e+30
      %v857 = vsel %vm855, %v249, 1e+30
      %v858 = vsel %vm256, %v856, inf
      %859 = vmin.xlane.f32.xlu0 %v858
      %v860 = vpop.xlane.xlu0 %859
      %v861 = vsel %vm256, %v857, inf
      %862 = vmin.xlane.f32.xlu0 %v861
      %v863 = vpop.xlane.xlu0 %862
      %v864 = vrsqrt.pop %v860
      %v865 = vmul.f32 %v864, %v860
      %v866 = vmul.f32 %v865, %v864
      %v867 = vmul.f32 0.5, %v866
      %v868 = vsub.f32 1.5, %v867
      %v869 = vmul.f32 %v864, %v868
      %v870 = vmul.f32 %v860, %v869
      %vm871 = vcmp.eq.f32.partialorder %v860, inf
      %v872 = vsel %vm871, %v860, %v870
      %vm873 = vcmp.eq.f32.partialorder %v860, 0.0
      %v874 = vand.u32 %v860, 2147483648
      %v875 = vsel %vm873, %v874, %v872
      %v876 = vrsqrt.pop %v863
      %v877 = vmul.f32 %v876, %v863
      %v878 = vmul.f32 %v877, %v876
      %v879 = vmul.f32 0.5, %v878
      %v880 = vsub.f32 1.5, %v879
      %v881 = vmul.f32 %v876, %v880
      %v882 = vmul.f32 %v863, %v881
      %vm883 = vcmp.eq.f32.partialorder %v863, inf
      %v884 = vsel %vm883, %v863, %v882
      %vm885 = vcmp.eq.f32.partialorder %v863, 0.0
      %v886 = vand.u32 %v863, 2147483648
      %v887 = vsel %vm885, %v886, %v884
      %v888 = vadd.f32 %v842, %v875
      %v889 = vadd.f32 %v843, %v887
      %v890 = vlog2.pop %v860
      %v891 = vmul.f32 %v890, 0.6931472
      %v892 = vlog2.pop %v863
      %v893 = vmul.f32 %v892, 0.6931472
      %v894 = vmul.f32 %v891, 0.5
      %v895 = vmul.f32 %v893, 0.5
      %v896 = vmul.f32 %v875, %v894
      %v897 = vmul.f32 %v887, %v895
      %v898 = vadd.f32 %v852, %v896
      %v899 = vadd.f32 %v853, %v897
      %vm900 = vcmp.gt.f32.partialorder %v248, %v860
      %vm901 = vcmp.gt.f32.partialorder %v249, %v863
      %v902 = vsel %vm900, %v248, 1e+30
      %v903 = vsel %vm901, %v249, 1e+30
      %v904 = vsel %vm256, %v902, inf
      %905 = vmin.xlane.f32.xlu0 %v904
      %v906 = vpop.xlane.xlu0 %905
      %v907 = vsel %vm256, %v903, inf
      %908 = vmin.xlane.f32.xlu0 %v907
      %v909 = vpop.xlane.xlu0 %908
      %v910 = vrsqrt.pop %v906
      %v911 = vmul.f32 %v910, %v906
      %v912 = vmul.f32 %v911, %v910
      %v913 = vmul.f32 0.5, %v912
      %v914 = vsub.f32 1.5, %v913
      %v915 = vmul.f32 %v910, %v914
      %v916 = vmul.f32 %v906, %v915
      %vm917 = vcmp.eq.f32.partialorder %v906, inf
      %v918 = vsel %vm917, %v906, %v916
      %vm919 = vcmp.eq.f32.partialorder %v906, 0.0
      %v920 = vand.u32 %v906, 2147483648
      %v921 = vsel %vm919, %v920, %v918
      %v922 = vrsqrt.pop %v909
      %v923 = vmul.f32 %v922, %v909
      %v924 = vmul.f32 %v923, %v922
      %v925 = vmul.f32 0.5, %v924
      %v926 = vsub.f32 1.5, %v925
      %v927 = vmul.f32 %v922, %v926
      %v928 = vmul.f32 %v909, %v927
      %vm929 = vcmp.eq.f32.partialorder %v909, inf
      %v930 = vsel %vm929, %v909, %v928
      %vm931 = vcmp.eq.f32.partialorder %v909, 0.0
      %v932 = vand.u32 %v909, 2147483648
      %v933 = vsel %vm931, %v932, %v930
      %v934 = vadd.f32 %v888, %v921
      %v935 = vadd.f32 %v889, %v933
      %v936 = vlog2.pop %v906
      %v937 = vmul.f32 %v936, 0.6931472
      %v938 = vlog2.pop %v909
      %v939 = vmul.f32 %v938, 0.6931472
      %v940 = vmul.f32 %v937, 0.5
      %v941 = vmul.f32 %v939, 0.5
      %v942 = vmul.f32 %v921, %v940
      %v943 = vmul.f32 %v933, %v941
      %v944 = vadd.f32 %v898, %v942
      %v945 = vadd.f32 %v899, %v943
      %vm946 = vcmp.gt.f32.partialorder %v248, %v906
      %vm947 = vcmp.gt.f32.partialorder %v249, %v909
      %v948 = vsel %vm946, %v248, 1e+30
      %v949 = vsel %vm947, %v249, 1e+30
      %v950 = vsel %vm256, %v948, inf
      %951 = vmin.xlane.f32.xlu0 %v950
      %v952 = vpop.xlane.xlu0 %951
      %v953 = vsel %vm256, %v949, inf
      %954 = vmin.xlane.f32.xlu0 %v953
      %v955 = vpop.xlane.xlu0 %954
      %v956 = vrsqrt.pop %v952
      %v957 = vmul.f32 %v956, %v952
      %v958 = vmul.f32 %v957, %v956
      %v959 = vmul.f32 0.5, %v958
      %v960 = vsub.f32 1.5, %v959
      %v961 = vmul.f32 %v956, %v960
      %v962 = vmul.f32 %v952, %v961
      %vm963 = vcmp.eq.f32.partialorder %v952, inf
      %v964 = vsel %vm963, %v952, %v962
      %vm965 = vcmp.eq.f32.partialorder %v952, 0.0
      %v966 = vand.u32 %v952, 2147483648
      %v967 = vsel %vm965, %v966, %v964
      %v968 = vrsqrt.pop %v955
      %v969 = vmul.f32 %v968, %v955
      %v970 = vmul.f32 %v969, %v968
      %v971 = vmul.f32 0.5, %v970
      %v972 = vsub.f32 1.5, %v971
      %v973 = vmul.f32 %v968, %v972
      %v974 = vmul.f32 %v955, %v973
      %vm975 = vcmp.eq.f32.partialorder %v955, inf
      %v976 = vsel %vm975, %v955, %v974
      %vm977 = vcmp.eq.f32.partialorder %v955, 0.0
      %v978 = vand.u32 %v955, 2147483648
      %v979 = vsel %vm977, %v978, %v976
      %v980 = vadd.f32 %v934, %v967
      %v981 = vadd.f32 %v935, %v979
      %v982 = vlog2.pop %v952
      %v983 = vmul.f32 %v982, 0.6931472
      %v984 = vlog2.pop %v955
      %v985 = vmul.f32 %v984, 0.6931472
      %v986 = vmul.f32 %v983, 0.5
      %v987 = vmul.f32 %v985, 0.5
      %v988 = vmul.f32 %v967, %v986
      %v989 = vmul.f32 %v979, %v987
      %v990 = vadd.f32 %v944, %v988
      %v991 = vadd.f32 %v945, %v989
      %vm992 = vcmp.gt.f32.partialorder %v248, %v952
      %vm993 = vcmp.gt.f32.partialorder %v249, %v955
      %v994 = vsel %vm992, %v248, 1e+30
      %v995 = vsel %vm993, %v249, 1e+30
      %v996 = vsel %vm256, %v994, inf
      %997 = vmin.xlane.f32.xlu0 %v996
      %v998 = vpop.xlane.xlu0 %997
      %v999 = vsel %vm256, %v995, inf
      %1000 = vmin.xlane.f32.xlu0 %v999
      %v1001 = vpop.xlane.xlu0 %1000
      %v1002 = vrsqrt.pop %v998
      %v1003 = vmul.f32 %v1002, %v998
      %v1004 = vmul.f32 %v1003, %v1002
      %v1005 = vmul.f32 0.5, %v1004
      %v1006 = vsub.f32 1.5, %v1005
      %v1007 = vmul.f32 %v1002, %v1006
      %v1008 = vmul.f32 %v998, %v1007
      %vm1009 = vcmp.eq.f32.partialorder %v998, inf
      %v1010 = vsel %vm1009, %v998, %v1008
      %vm1011 = vcmp.eq.f32.partialorder %v998, 0.0
      %v1012 = vand.u32 %v998, 2147483648
      %v1013 = vsel %vm1011, %v1012, %v1010
      %v1014 = vrsqrt.pop %v1001
      %v1015 = vmul.f32 %v1014, %v1001
      %v1016 = vmul.f32 %v1015, %v1014
      %v1017 = vmul.f32 0.5, %v1016
      %v1018 = vsub.f32 1.5, %v1017
      %v1019 = vmul.f32 %v1014, %v1018
      %v1020 = vmul.f32 %v1001, %v1019
      %vm1021 = vcmp.eq.f32.partialorder %v1001, inf
      %v1022 = vsel %vm1021, %v1001, %v1020
      %vm1023 = vcmp.eq.f32.partialorder %v1001, 0.0
      %v1024 = vand.u32 %v1001, 2147483648
      %v1025 = vsel %vm1023, %v1024, %v1022
      %v1026 = vadd.f32 %v980, %v1013
      %v1027 = vadd.f32 %v981, %v1025
      %v1028 = vlog2.pop %v998
      %v1029 = vmul.f32 %v1028, 0.6931472
      %v1030 = vlog2.pop %v1001
      %v1031 = vmul.f32 %v1030, 0.6931472
      %v1032 = vmul.f32 %v1029, 0.5
      %v1033 = vmul.f32 %v1031, 0.5
      %v1034 = vmul.f32 %v1013, %v1032
      %v1035 = vmul.f32 %v1025, %v1033
      %v1036 = vadd.f32 %v990, %v1034
      %v1037 = vadd.f32 %v991, %v1035
      %vm1038 = vcmp.gt.f32.partialorder %v248, %v998
      %vm1039 = vcmp.gt.f32.partialorder %v249, %v1001
      %v1040 = vsel %vm1038, %v248, 1e+30
      %v1041 = vsel %vm1039, %v249, 1e+30
      %v1042 = vsel %vm256, %v1040, inf
      %1043 = vmin.xlane.f32.xlu0 %v1042
      %v1044 = vpop.xlane.xlu0 %1043
      %v1045 = vsel %vm256, %v1041, inf
      %1046 = vmin.xlane.f32.xlu0 %v1045
      %v1047 = vpop.xlane.xlu0 %1046
      %v1048 = vrsqrt.pop %v1044
      %v1049 = vmul.f32 %v1048, %v1044
      %v1050 = vmul.f32 %v1049, %v1048
      %v1051 = vmul.f32 0.5, %v1050
      %v1052 = vsub.f32 1.5, %v1051
      %v1053 = vmul.f32 %v1048, %v1052
      %v1054 = vmul.f32 %v1044, %v1053
      %vm1055 = vcmp.eq.f32.partialorder %v1044, inf
      %v1056 = vsel %vm1055, %v1044, %v1054
      %vm1057 = vcmp.eq.f32.partialorder %v1044, 0.0
      %v1058 = vand.u32 %v1044, 2147483648
      %v1059 = vsel %vm1057, %v1058, %v1056
      %v1060 = vrsqrt.pop %v1047
      %v1061 = vmul.f32 %v1060, %v1047
      %v1062 = vmul.f32 %v1061, %v1060
      %v1063 = vmul.f32 0.5, %v1062
      %v1064 = vsub.f32 1.5, %v1063
      %v1065 = vmul.f32 %v1060, %v1064
      %v1066 = vmul.f32 %v1047, %v1065
      %vm1067 = vcmp.eq.f32.partialorder %v1047, inf
      %v1068 = vsel %vm1067, %v1047, %v1066
      %vm1069 = vcmp.eq.f32.partialorder %v1047, 0.0
      %v1070 = vand.u32 %v1047, 2147483648
      %v1071 = vsel %vm1069, %v1070, %v1068
      %v1072 = vadd.f32 %v1026, %v1059
      %v1073 = vadd.f32 %v1027, %v1071
      %v1074 = vlog2.pop %v1044
      %v1075 = vmul.f32 %v1074, 0.6931472
      %v1076 = vlog2.pop %v1047
      %v1077 = vmul.f32 %v1076, 0.6931472
      %v1078 = vmul.f32 %v1075, 0.5
      %v1079 = vmul.f32 %v1077, 0.5
      %v1080 = vmul.f32 %v1059, %v1078
      %v1081 = vmul.f32 %v1071, %v1079
      %v1082 = vadd.f32 %v1036, %v1080
      %v1083 = vadd.f32 %v1037, %v1081
      %vm1084 = vcmp.gt.f32.partialorder %v248, %v1044
      %vm1085 = vcmp.gt.f32.partialorder %v249, %v1047
      %v1086 = vsel %vm1084, %v248, 1e+30
      %v1087 = vsel %vm1085, %v249, 1e+30
      %v1088 = vsel %vm256, %v1086, inf
      %1089 = vmin.xlane.f32.xlu0 %v1088
      %v1090 = vpop.xlane.xlu0 %1089
      %v1091 = vsel %vm256, %v1087, inf
      %1092 = vmin.xlane.f32.xlu0 %v1091
      %v1093 = vpop.xlane.xlu0 %1092
      %v1094 = vrsqrt.pop %v1090
      %v1095 = vmul.f32 %v1094, %v1090
      %v1096 = vmul.f32 %v1095, %v1094
      %v1097 = vmul.f32 0.5, %v1096
      %v1098 = vsub.f32 1.5, %v1097
      %v1099 = vmul.f32 %v1094, %v1098
      %v1100 = vmul.f32 %v1090, %v1099
      %vm1101 = vcmp.eq.f32.partialorder %v1090, inf
      %v1102 = vsel %vm1101, %v1090, %v1100
      %vm1103 = vcmp.eq.f32.partialorder %v1090, 0.0
      %v1104 = vand.u32 %v1090, 2147483648
      %v1105 = vsel %vm1103, %v1104, %v1102
      %v1106 = vrsqrt.pop %v1093
      %v1107 = vmul.f32 %v1106, %v1093
      %v1108 = vmul.f32 %v1107, %v1106
      %v1109 = vmul.f32 0.5, %v1108
      %v1110 = vsub.f32 1.5, %v1109
      %v1111 = vmul.f32 %v1106, %v1110
      %v1112 = vmul.f32 %v1093, %v1111
      %vm1113 = vcmp.eq.f32.partialorder %v1093, inf
      %v1114 = vsel %vm1113, %v1093, %v1112
      %vm1115 = vcmp.eq.f32.partialorder %v1093, 0.0
      %v1116 = vand.u32 %v1093, 2147483648
      %v1117 = vsel %vm1115, %v1116, %v1114
      %v1118 = vadd.f32 %v1072, %v1105
      %v1119 = vadd.f32 %v1073, %v1117
      %v1120 = vlog2.pop %v1090
      %v1121 = vmul.f32 %v1120, 0.6931472
      %v1122 = vlog2.pop %v1093
      %v1123 = vmul.f32 %v1122, 0.6931472
      %v1124 = vmul.f32 %v1121, 0.5
      %v1125 = vmul.f32 %v1123, 0.5
      %v1126 = vmul.f32 %v1105, %v1124
      %v1127 = vmul.f32 %v1117, %v1125
      %v1128 = vadd.f32 %v1082, %v1126
      %v1129 = vadd.f32 %v1083, %v1127
      %vm1130 = vcmp.gt.f32.partialorder %v248, %v1090
      %vm1131 = vcmp.gt.f32.partialorder %v249, %v1093
      %v1132 = vsel %vm1130, %v248, 1e+30
      %v1133 = vsel %vm1131, %v249, 1e+30
      %v1134 = vsel %vm256, %v1132, inf
      %1135 = vmin.xlane.f32.xlu0 %v1134
      %v1136 = vpop.xlane.xlu0 %1135
      %v1137 = vsel %vm256, %v1133, inf
      %1138 = vmin.xlane.f32.xlu0 %v1137
      %v1139 = vpop.xlane.xlu0 %1138
      %v1140 = vrsqrt.pop %v1136
      %v1141 = vmul.f32 %v1140, %v1136
      %v1142 = vmul.f32 %v1141, %v1140
      %v1143 = vmul.f32 0.5, %v1142
      %v1144 = vsub.f32 1.5, %v1143
      %v1145 = vmul.f32 %v1140, %v1144
      %v1146 = vmul.f32 %v1136, %v1145
      %vm1147 = vcmp.eq.f32.partialorder %v1136, inf
      %v1148 = vsel %vm1147, %v1136, %v1146
      %vm1149 = vcmp.eq.f32.partialorder %v1136, 0.0
      %v1150 = vand.u32 %v1136, 2147483648
      %v1151 = vsel %vm1149, %v1150, %v1148
      %v1152 = vrsqrt.pop %v1139
      %v1153 = vmul.f32 %v1152, %v1139
      %v1154 = vmul.f32 %v1153, %v1152
      %v1155 = vmul.f32 0.5, %v1154
      %v1156 = vsub.f32 1.5, %v1155
      %v1157 = vmul.f32 %v1152, %v1156
      %v1158 = vmul.f32 %v1139, %v1157
      %vm1159 = vcmp.eq.f32.partialorder %v1139, inf
      %v1160 = vsel %vm1159, %v1139, %v1158
      %vm1161 = vcmp.eq.f32.partialorder %v1139, 0.0
      %v1162 = vand.u32 %v1139, 2147483648
      %v1163 = vsel %vm1161, %v1162, %v1160
      %v1164 = vadd.f32 %v1118, %v1151
      %v1165 = vadd.f32 %v1119, %v1163
      %v1166 = vlog2.pop %v1136
      %v1167 = vmul.f32 %v1166, 0.6931472
      %v1168 = vlog2.pop %v1139
      %v1169 = vmul.f32 %v1168, 0.6931472
      %v1170 = vmul.f32 %v1167, 0.5
      %v1171 = vmul.f32 %v1169, 0.5
      %v1172 = vmul.f32 %v1151, %v1170
      %v1173 = vmul.f32 %v1163, %v1171
      %v1174 = vadd.f32 %v1128, %v1172
      %v1175 = vadd.f32 %v1129, %v1173
      %vm1176 = vcmp.gt.f32.partialorder %v248, %v1136
      %vm1177 = vcmp.gt.f32.partialorder %v249, %v1139
      %v1178 = vsel %vm1176, %v248, 1e+30
      %v1179 = vsel %vm1177, %v249, 1e+30
      %v1180 = vsel %vm256, %v1178, inf
      %1181 = vmin.xlane.f32.xlu0 %v1180
      %v1182 = vpop.xlane.xlu0 %1181
      %v1183 = vsel %vm256, %v1179, inf
      %1184 = vmin.xlane.f32.xlu0 %v1183
      %v1185 = vpop.xlane.xlu0 %1184
      %v1186 = vrsqrt.pop %v1182
      %v1187 = vmul.f32 %v1186, %v1182
      %v1188 = vmul.f32 %v1187, %v1186
      %v1189 = vmul.f32 0.5, %v1188
      %v1190 = vsub.f32 1.5, %v1189
      %v1191 = vmul.f32 %v1186, %v1190
      %v1192 = vmul.f32 %v1182, %v1191
      %vm1193 = vcmp.eq.f32.partialorder %v1182, inf
      %v1194 = vsel %vm1193, %v1182, %v1192
      %vm1195 = vcmp.eq.f32.partialorder %v1182, 0.0
      %v1196 = vand.u32 %v1182, 2147483648
      %v1197 = vsel %vm1195, %v1196, %v1194
      %v1198 = vrsqrt.pop %v1185
      %v1199 = vmul.f32 %v1198, %v1185
      %v1200 = vmul.f32 %v1199, %v1198
      %v1201 = vmul.f32 0.5, %v1200
      %v1202 = vsub.f32 1.5, %v1201
      %v1203 = vmul.f32 %v1198, %v1202
      %v1204 = vmul.f32 %v1185, %v1203
      %vm1205 = vcmp.eq.f32.partialorder %v1185, inf
      %v1206 = vsel %vm1205, %v1185, %v1204
      %vm1207 = vcmp.eq.f32.partialorder %v1185, 0.0
      %v1208 = vand.u32 %v1185, 2147483648
      %v1209 = vsel %vm1207, %v1208, %v1206
      %v1210 = vadd.f32 %v1164, %v1197
      %v1211 = vadd.f32 %v1165, %v1209
      %v1212 = vlog2.pop %v1182
      %v1213 = vmul.f32 %v1212, 0.6931472
      %v1214 = vlog2.pop %v1185
      %v1215 = vmul.f32 %v1214, 0.6931472
      %v1216 = vmul.f32 %v1213, 0.5
      %v1217 = vmul.f32 %v1215, 0.5
      %v1218 = vmul.f32 %v1197, %v1216
      %v1219 = vmul.f32 %v1209, %v1217
      %v1220 = vadd.f32 %v1174, %v1218
      %v1221 = vadd.f32 %v1175, %v1219
      %vm1222 = vcmp.gt.f32.partialorder %v248, %v1182
      %vm1223 = vcmp.gt.f32.partialorder %v249, %v1185
      %v1224 = vsel %vm1222, %v248, 1e+30
      %v1225 = vsel %vm1223, %v249, 1e+30
      %v1226 = vsel %vm256, %v1224, inf
      %1227 = vmin.xlane.f32.xlu0 %v1226
      %v1228 = vpop.xlane.xlu0 %1227
      %v1229 = vsel %vm256, %v1225, inf
      %1230 = vmin.xlane.f32.xlu0 %v1229
      %v1231 = vpop.xlane.xlu0 %1230
      %v1232 = vrsqrt.pop %v1228
      %v1233 = vmul.f32 %v1232, %v1228
      %v1234 = vmul.f32 %v1233, %v1232
      %v1235 = vmul.f32 0.5, %v1234
      %v1236 = vsub.f32 1.5, %v1235
      %v1237 = vmul.f32 %v1232, %v1236
      %v1238 = vmul.f32 %v1228, %v1237
      %vm1239 = vcmp.eq.f32.partialorder %v1228, inf
      %v1240 = vsel %vm1239, %v1228, %v1238
      %vm1241 = vcmp.eq.f32.partialorder %v1228, 0.0
      %v1242 = vand.u32 %v1228, 2147483648
      %v1243 = vsel %vm1241, %v1242, %v1240
      %v1244 = vrsqrt.pop %v1231
      %v1245 = vmul.f32 %v1244, %v1231
      %v1246 = vmul.f32 %v1245, %v1244
      %v1247 = vmul.f32 0.5, %v1246
      %v1248 = vsub.f32 1.5, %v1247
      %v1249 = vmul.f32 %v1244, %v1248
      %v1250 = vmul.f32 %v1231, %v1249
      %vm1251 = vcmp.eq.f32.partialorder %v1231, inf
      %v1252 = vsel %vm1251, %v1231, %v1250
      %vm1253 = vcmp.eq.f32.partialorder %v1231, 0.0
      %v1254 = vand.u32 %v1231, 2147483648
      %v1255 = vsel %vm1253, %v1254, %v1252
      %v1256 = vadd.f32 %v1210, %v1243
      %v1257 = vadd.f32 %v1211, %v1255
      %v1258 = vlog2.pop %v1228
      %v1259 = vmul.f32 %v1258, 0.6931472
      %v1260 = vlog2.pop %v1231
      %v1261 = vmul.f32 %v1260, 0.6931472
      %v1262 = vmul.f32 %v1259, 0.5
      %v1263 = vmul.f32 %v1261, 0.5
      %v1264 = vmul.f32 %v1243, %v1262
      %v1265 = vmul.f32 %v1255, %v1263
      %v1266 = vadd.f32 %v1220, %v1264
      %v1267 = vadd.f32 %v1221, %v1265
      %vm1268 = vcmp.gt.f32.partialorder %v248, %v1228
      %vm1269 = vcmp.gt.f32.partialorder %v249, %v1231
      %v1270 = vsel %vm1268, %v248, 1e+30
      %v1271 = vsel %vm1269, %v249, 1e+30
      %v1272 = vsel %vm256, %v1270, inf
      %1273 = vmin.xlane.f32.xlu0 %v1272
      %v1274 = vpop.xlane.xlu0 %1273
      %v1275 = vsel %vm256, %v1271, inf
      %1276 = vmin.xlane.f32.xlu0 %v1275
      %v1277 = vpop.xlane.xlu0 %1276
      %v1278 = vrsqrt.pop %v1274
      %v1279 = vmul.f32 %v1278, %v1274
      %v1280 = vmul.f32 %v1279, %v1278
      %v1281 = vmul.f32 0.5, %v1280
      %v1282 = vsub.f32 1.5, %v1281
      %v1283 = vmul.f32 %v1278, %v1282
      %v1284 = vmul.f32 %v1274, %v1283
      %vm1285 = vcmp.eq.f32.partialorder %v1274, inf
      %v1286 = vsel %vm1285, %v1274, %v1284
      %vm1287 = vcmp.eq.f32.partialorder %v1274, 0.0
      %v1288 = vand.u32 %v1274, 2147483648
      %v1289 = vsel %vm1287, %v1288, %v1286
      %v1290 = vrsqrt.pop %v1277
      %v1291 = vmul.f32 %v1290, %v1277
      %v1292 = vmul.f32 %v1291, %v1290
      %v1293 = vmul.f32 0.5, %v1292
      %v1294 = vsub.f32 1.5, %v1293
      %v1295 = vmul.f32 %v1290, %v1294
      %v1296 = vmul.f32 %v1277, %v1295
      %vm1297 = vcmp.eq.f32.partialorder %v1277, inf
      %v1298 = vsel %vm1297, %v1277, %v1296
      %vm1299 = vcmp.eq.f32.partialorder %v1277, 0.0
      %v1300 = vand.u32 %v1277, 2147483648
      %v1301 = vsel %vm1299, %v1300, %v1298
      %v1302 = vadd.f32 %v1256, %v1289
      %v1303 = vadd.f32 %v1257, %v1301
      %v1304 = vlog2.pop %v1274
      %v1305 = vmul.f32 %v1304, 0.6931472
      %v1306 = vlog2.pop %v1277
      %v1307 = vmul.f32 %v1306, 0.6931472
      %v1308 = vmul.f32 %v1305, 0.5
      %v1309 = vmul.f32 %v1307, 0.5
      %v1310 = vmul.f32 %v1289, %v1308
      %v1311 = vmul.f32 %v1301, %v1309
      %v1312 = vadd.f32 %v1266, %v1310
      %v1313 = vadd.f32 %v1267, %v1311
      %vm1314 = vcmp.gt.f32.partialorder %v248, %v1274
      %vm1315 = vcmp.gt.f32.partialorder %v249, %v1277
      %v1316 = vsel %vm1314, %v248, 1e+30
      %v1317 = vsel %vm1315, %v249, 1e+30
      %v1318 = vsel %vm256, %v1316, inf
      %1319 = vmin.xlane.f32.xlu0 %v1318
      %v1320 = vpop.xlane.xlu0 %1319
      %v1321 = vsel %vm256, %v1317, inf
      %1322 = vmin.xlane.f32.xlu0 %v1321
      %v1323 = vpop.xlane.xlu0 %1322
      %v1324 = vrsqrt.pop %v1320
      %v1325 = vmul.f32 %v1324, %v1320
      %v1326 = vmul.f32 %v1325, %v1324
      %v1327 = vmul.f32 0.5, %v1326
      %v1328 = vsub.f32 1.5, %v1327
      %v1329 = vmul.f32 %v1324, %v1328
      %v1330 = vmul.f32 %v1320, %v1329
      %vm1331 = vcmp.eq.f32.partialorder %v1320, inf
      %v1332 = vsel %vm1331, %v1320, %v1330
      %vm1333 = vcmp.eq.f32.partialorder %v1320, 0.0
      %v1334 = vand.u32 %v1320, 2147483648
      %v1335 = vsel %vm1333, %v1334, %v1332
      %v1336 = vrsqrt.pop %v1323
      %v1337 = vmul.f32 %v1336, %v1323
      %v1338 = vmul.f32 %v1337, %v1336
      %v1339 = vmul.f32 0.5, %v1338
      %v1340 = vsub.f32 1.5, %v1339
      %v1341 = vmul.f32 %v1336, %v1340
      %v1342 = vmul.f32 %v1323, %v1341
      %vm1343 = vcmp.eq.f32.partialorder %v1323, inf
      %v1344 = vsel %vm1343, %v1323, %v1342
      %vm1345 = vcmp.eq.f32.partialorder %v1323, 0.0
      %v1346 = vand.u32 %v1323, 2147483648
      %v1347 = vsel %vm1345, %v1346, %v1344
      %v1348 = vadd.f32 %v1302, %v1335
      %v1349 = vadd.f32 %v1303, %v1347
      %v1350 = vlog2.pop %v1320
      %v1351 = vmul.f32 %v1350, 0.6931472
      %v1352 = vlog2.pop %v1323
      %v1353 = vmul.f32 %v1352, 0.6931472
      %v1354 = vmul.f32 %v1351, 0.5
      %v1355 = vmul.f32 %v1353, 0.5
      %v1356 = vmul.f32 %v1335, %v1354
      %v1357 = vmul.f32 %v1347, %v1355
      %v1358 = vadd.f32 %v1312, %v1356
      %v1359 = vadd.f32 %v1313, %v1357
      %vm1360 = vcmp.gt.f32.partialorder %v248, %v1320
      %vm1361 = vcmp.gt.f32.partialorder %v249, %v1323
      %v1362 = vsel %vm1360, %v248, 1e+30
      %v1363 = vsel %vm1361, %v249, 1e+30
      %v1364 = vsel %vm256, %v1362, inf
      %1365 = vmin.xlane.f32.xlu0 %v1364
      %v1366 = vpop.xlane.xlu0 %1365
      %v1367 = vsel %vm256, %v1363, inf
      %1368 = vmin.xlane.f32.xlu0 %v1367
      %v1369 = vpop.xlane.xlu0 %1368
      %v1370 = vrsqrt.pop %v1366
      %v1371 = vmul.f32 %v1370, %v1366
      %v1372 = vmul.f32 %v1371, %v1370
      %v1373 = vmul.f32 0.5, %v1372
      %v1374 = vsub.f32 1.5, %v1373
      %v1375 = vmul.f32 %v1370, %v1374
      %v1376 = vmul.f32 %v1366, %v1375
      %vm1377 = vcmp.eq.f32.partialorder %v1366, inf
      %v1378 = vsel %vm1377, %v1366, %v1376
      %vm1379 = vcmp.eq.f32.partialorder %v1366, 0.0
      %v1380 = vand.u32 %v1366, 2147483648
      %v1381 = vsel %vm1379, %v1380, %v1378
      %v1382 = vrsqrt.pop %v1369
      %v1383 = vmul.f32 %v1382, %v1369
      %v1384 = vmul.f32 %v1383, %v1382
      %v1385 = vmul.f32 0.5, %v1384
      %v1386 = vsub.f32 1.5, %v1385
      %v1387 = vmul.f32 %v1382, %v1386
      %v1388 = vmul.f32 %v1369, %v1387
      %vm1389 = vcmp.eq.f32.partialorder %v1369, inf
      %v1390 = vsel %vm1389, %v1369, %v1388
      %vm1391 = vcmp.eq.f32.partialorder %v1369, 0.0
      %v1392 = vand.u32 %v1369, 2147483648
      %v1393 = vsel %vm1391, %v1392, %v1390
      %v1394 = vadd.f32 %v1348, %v1381
      %v1395 = vadd.f32 %v1349, %v1393
      %v1396 = vlog2.pop %v1366
      %v1397 = vmul.f32 %v1396, 0.6931472
      %v1398 = vlog2.pop %v1369
      %v1399 = vmul.f32 %v1398, 0.6931472
      %v1400 = vmul.f32 %v1397, 0.5
      %v1401 = vmul.f32 %v1399, 0.5
      %v1402 = vmul.f32 %v1381, %v1400
      %v1403 = vmul.f32 %v1393, %v1401
      %v1404 = vadd.f32 %v1358, %v1402
      %v1405 = vadd.f32 %v1359, %v1403
      %vm1406 = vcmp.gt.f32.partialorder %v248, %v1366
      %vm1407 = vcmp.gt.f32.partialorder %v249, %v1369
      %v1408 = vsel %vm1406, %v248, 1e+30
      %v1409 = vsel %vm1407, %v249, 1e+30
      %v1410 = vsel %vm256, %v1408, inf
      %1411 = vmin.xlane.f32.xlu0 %v1410
      %v1412 = vpop.xlane.xlu0 %1411
      %v1413 = vsel %vm256, %v1409, inf
      %1414 = vmin.xlane.f32.xlu0 %v1413
      %v1415 = vpop.xlane.xlu0 %1414
      %v1416 = vrsqrt.pop %v1412
      %v1417 = vmul.f32 %v1416, %v1412
      %v1418 = vmul.f32 %v1417, %v1416
      %v1419 = vmul.f32 0.5, %v1418
      %v1420 = vsub.f32 1.5, %v1419
      %v1421 = vmul.f32 %v1416, %v1420
      %v1422 = vmul.f32 %v1412, %v1421
      %vm1423 = vcmp.eq.f32.partialorder %v1412, inf
      %v1424 = vsel %vm1423, %v1412, %v1422
      %vm1425 = vcmp.eq.f32.partialorder %v1412, 0.0
      %v1426 = vand.u32 %v1412, 2147483648
      %v1427 = vsel %vm1425, %v1426, %v1424
      %v1428 = vrsqrt.pop %v1415
      %v1429 = vmul.f32 %v1428, %v1415
      %v1430 = vmul.f32 %v1429, %v1428
      %v1431 = vmul.f32 0.5, %v1430
      %v1432 = vsub.f32 1.5, %v1431
      %v1433 = vmul.f32 %v1428, %v1432
      %v1434 = vmul.f32 %v1415, %v1433
      %vm1435 = vcmp.eq.f32.partialorder %v1415, inf
      %v1436 = vsel %vm1435, %v1415, %v1434
      %vm1437 = vcmp.eq.f32.partialorder %v1415, 0.0
      %v1438 = vand.u32 %v1415, 2147483648
      %v1439 = vsel %vm1437, %v1438, %v1436
      %v1440 = vadd.f32 %v1394, %v1427
      %v1441 = vadd.f32 %v1395, %v1439
      %v1442 = vlog2.pop %v1412
      %v1443 = vmul.f32 %v1442, 0.6931472
      %v1444 = vlog2.pop %v1415
      %v1445 = vmul.f32 %v1444, 0.6931472
      %v1446 = vmul.f32 %v1443, 0.5
      %v1447 = vmul.f32 %v1445, 0.5
      %v1448 = vmul.f32 %v1427, %v1446
      %v1449 = vmul.f32 %v1439, %v1447
      %v1450 = vadd.f32 %v1404, %v1448
      %v1451 = vadd.f32 %v1405, %v1449
      %v1452 = vlog2.pop %v520
      %v1453 = vmul.f32 %v1452, 0.6931472
      %v1454 = vlog2.pop %v521
      %v1455 = vmul.f32 %v1454, 0.6931472
      %v1456 = vrcp.pop %v520
      %v1457 = vmul.f32 %v520, %v1456
      %v1458 = vsub.f32 1.0, %v1457
      %v1459 = vmul.f32 %v1456, %v1458
      %v1460 = vadd.f32 %v1456, %v1459
      %vm1461 = vweird.f32 %v520
      %vm1462 = vweird.f32 %v1456
      %vm1463 = vmor %vm1461, %vm1462
      %v1464 = vsel %vm1463, %v1456, %v1460
      %v1465 = vand.u32 2147483647, %v520
      %vm1466 = vcmp.eq.f32.partialorder %v1465, 8.507059e+37
      %v1467 = vand.u32 %v520, 2147483648
      %v1468 = vor.u32 1.1754944e-38, %v1467
      %v1469 = vsel %vm1466, %v1468, %v1464
      %v1470 = vmul.f32 %v530, %v1469
      %v1471 = vrcp.pop %v521
      %v1472 = vmul.f32 %v521, %v1471
      %v1473 = vsub.f32 1.0, %v1472
      %v1474 = vmul.f32 %v1471, %v1473
      %v1475 = vadd.f32 %v1471, %v1474
      %vm1476 = vweird.f32 %v521
      %vm1477 = vweird.f32 %v1471
      %vm1478 = vmor %vm1476, %vm1477
      %v1479 = vsel %vm1478, %v1471, %v1475
      %v1480 = vand.u32 2147483647, %v521
      %vm1481 = vcmp.eq.f32.partialorder %v1480, 8.507059e+37
      %v1482 = vand.u32 %v521, 2147483648
      %v1483 = vor.u32 1.1754944e-38, %v1482
      %v1484 = vsel %vm1481, %v1483, %v1479
      %v1485 = vmul.f32 %v531, %v1484
      %v1486 = vsub.f32 %v1453, %v1470
      %v1487 = vsub.f32 %v1455, %v1485
      %vm1488 = vcmask 31768
      %1489 = vst.msk [vmem:[%s198] sm:$0xff] %vm1488, %v1486
      %1490 = vst.msk [vmem:[%s198 + $0x8] sm:$0xff] %vm1488, %v1487
      %v1491 = vlog2.pop %v750
      %v1492 = vmul.f32 %v1491, 0.6931472
      %v1493 = vlog2.pop %v751
      %v1494 = vmul.f32 %v1493, 0.6931472
      %v1495 = vrcp.pop %v750
      %v1496 = vmul.f32 %v750, %v1495
      %v1497 = vsub.f32 1.0, %v1496
      %v1498 = vmul.f32 %v1495, %v1497
      %v1499 = vadd.f32 %v1495, %v1498
      %vm1500 = vweird.f32 %v750
      %vm1501 = vweird.f32 %v1495
      %vm1502 = vmor %vm1500, %vm1501
      %v1503 = vsel %vm1502, %v1495, %v1499
      %v1504 = vand.u32 2147483647, %v750
      %vm1505 = vcmp.eq.f32.partialorder %v1504, 8.507059e+37
      %v1506 = vand.u32 %v750, 2147483648
      %v1507 = vor.u32 1.1754944e-38, %v1506
      %v1508 = vsel %vm1505, %v1507, %v1503
      %v1509 = vmul.f32 %v760, %v1508
      %v1510 = vrcp.pop %v751
      %v1511 = vmul.f32 %v751, %v1510
      %v1512 = vsub.f32 1.0, %v1511
      %v1513 = vmul.f32 %v1510, %v1512
      %v1514 = vadd.f32 %v1510, %v1513
      %vm1515 = vweird.f32 %v751
      %vm1516 = vweird.f32 %v1510
      %vm1517 = vmor %vm1515, %vm1516
      %v1518 = vsel %vm1517, %v1510, %v1514
      %v1519 = vand.u32 2147483647, %v751
      %vm1520 = vcmp.eq.f32.partialorder %v1519, 8.507059e+37
      %v1521 = vand.u32 %v751, 2147483648
      %v1522 = vor.u32 1.1754944e-38, %v1521
      %v1523 = vsel %vm1520, %v1522, %v1518
      %v1524 = vmul.f32 %v761, %v1523
      %v1525 = vsub.f32 %v1492, %v1509
      %v1526 = vsub.f32 %v1494, %v1524
      %vm1527 = vcmask 39968
      %1528 = vst.msk [vmem:[%s198] sm:$0xff] %vm1527, %v1525
      %1529 = vst.msk [vmem:[%s198 + $0x8] sm:$0xff] %vm1527, %v1526
      %v1530 = vlog2.pop %v1440
      %v1531 = vmul.f32 %v1530, 0.6931472
      %v1532 = vlog2.pop %v1441
      %v1533 = vmul.f32 %v1532, 0.6931472
      %v1534 = vrcp.pop %v1440
      %v1535 = vmul.f32 %v1440, %v1534
      %v1536 = vsub.f32 1.0, %v1535
      %v1537 = vmul.f32 %v1534, %v1536
      %v1538 = vadd.f32 %v1534, %v1537
      %vm1539 = vweird.f32 %v1440
      %vm1540 = vweird.f32 %v1534
      %vm1541 = vmor %vm1539, %vm1540
      %v1542 = vsel %vm1541, %v1534, %v1538
      %v1543 = vand.u32 2147483647, %v1440
      %vm1544 = vcmp.eq.f32.partialorder %v1543, 8.507059e+37
      %v1545 = vand.u32 %v1440, 2147483648
      %v1546 = vor.u32 1.1754944e-38, %v1545
      %v1547 = vsel %vm1544, %v1546, %v1542
      %v1548 = vmul.f32 %v1450, %v1547
      %v1549 = vrcp.pop %v1441
      %v1550 = vmul.f32 %v1441, %v1549
      %v1551 = vsub.f32 1.0, %v1550
      %v1552 = vmul.f32 %v1549, %v1551
      %v1553 = vadd.f32 %v1549, %v1552
      %vm1554 = vweird.f32 %v1441
      %vm1555 = vweird.f32 %v1549
      %vm1556 = vmor %vm1554, %vm1555
      %v1557 = vsel %vm1556, %v1549, %v1553
      %v1558 = vand.u32 2147483647, %v1441
      %vm1559 = vcmp.eq.f32.partialorder %v1558, 8.507059e+37
      %v1560 = vand.u32 %v1441, 2147483648
      %v1561 = vor.u32 1.1754944e-38, %v1560
      %v1562 = vsel %vm1559, %v1561, %v1557
      %v1563 = vmul.f32 %v1451, %v1562
      %v1564 = vsub.f32 %v1531, %v1548
      %v1565 = vsub.f32 %v1533, %v1563
      %vm1566 = vcmask 48168
      %1567 = vst.msk [vmem:[%s198] sm:$0xff] %vm1566, %v1564
      %1568 = vst.msk [vmem:[%s198 + $0x8] sm:$0xff] %vm1566, %v1565
      %s1569 = smul.u32 2, %s18
      %p1570 = scmp.lt.s32.totalorder %s17, 0
      %s1571 = scalar_select %p1570, %s17, 0
      %p1572 = scmp.lt.s32.totalorder %s1569, 3
      %s1573 = scalar_select %p1572, %s1569, 3
      %s1574 = smul.addr %s1571, 4
      %s1575 = sadd.s32 %s1573, %s1574
      %s1576 = smul.addr %s1575, 8
      %s1577 = scalar_lea.vmem %s2, %s1576
      // Predicated region
      $region29: #{neighbor_structure_embedding.2} parent=27 // pred_check
        %p1578 = pneg %p99
      $region30: #{neighbor_structure_embedding.2} parent=27 // pred_check_branch
        %1580 = sbr.rel (%p1578) target = $region32
      $region31: #{neighbor_structure_embedding.2} parent=27 // pred_region
        %s1581 = smul.u32 2, %s18
      $region32: #{neighbor_structure_embedding.2} parent=27 // pred_fallthru
        _
    $region28: #{neighbor_structure_embedding.2} parent=5 // pred_fallthru
      _
    %p1582 = scmp.le.s32.totalorder 2, %s8
    // Predicated region
    $region33: #{neighbor_structure_embedding.2} parent=5 // pred_check
      %p1583 = pneg %p1582
    $region34: #{neighbor_structure_embedding.2} parent=5 // pred_check_branch
      %1585 = sbr.rel (%p1583) target = $region36
    $region35: #{neighbor_structure_embedding.2} parent=5 // pred_region
      %s1586 = ssub.s32 %s8, 2
      // Predicated region
      $region37: #{neighbor_structure_embedding.2} parent=35 // pred_check
        %p1587 = pneg %p105
      $region38: #{neighbor_structure_embedding.2} parent=35 // pred_check_branch
        %1589 = sbr.rel (%p1587) target = $region40
      $region39: #{neighbor_structure_embedding.2} parent=35 // pred_region
        %s1590 = smul.u32 2, %s20
        %p1591 = scmp.lt.s32.totalorder %s19, 0
        %s1592 = scalar_select %p1591, %s19, 0
        %p1593 = scmp.lt.s32.totalorder %s1590, 3
        %s1594 = scalar_select %p1593, %s1590, 3
        %s1595 = smul.addr %s1592, 4
        %s1596 = sadd.s32 %s1594, %s1595
        %s1597 = smul.addr %s1596, 8
        %s1598 = scalar_lea.vmem %s2, %s1597
      $region40: #{neighbor_structure_embedding.2} parent=35 // pred_fallthru
        _
    $region36: #{neighbor_structure_embedding.2} parent=5 // pred_fallthru
      _
  $region6: #{neighbor_structure_embedding.2} parent=0 // loop_footer
    %s12 = sadd.s32 1, %s8
  $region7: #{neighbor_structure_embedding.2} parent=0 // loop_footer_branch
    %7 = sbr.rel target = $region3
  $region8: #{neighbor_structure_embedding.2} parent=0 // loop_exit
    _

</llo_original>
